<compile_context>
chip_gen: v7x
topology: tpu7x:2x2x1
jax: 0.10.0
libtpu: 0.0.40
codegen_flags: <defaults>
</compile_context>

<pallas_src>
import functools

import jax
import jax.numpy as jnp
from jax.experimental import pallas as pl
from jax.experimental.pallas import tpu as pltpu


def _round_up(x, m):
    return (x + m - 1) // m * m


# ------------------------- Pallas kernels -------------------------

def _conv_mm_kernel(*refs, relu, has_res):
    """O = relu?((A @ B) + bias [+ residual]); BN scale is pre-folded into B."""
    if has_res:
        a_ref, b_ref, c_ref, r_ref, o_ref = refs
    else:
        a_ref, b_ref, c_ref, o_ref = refs
        r_ref = None
    y = jnp.dot(a_ref[...], b_ref[...], preferred_element_type=jnp.float32)
    y = y + c_ref[...]
    if has_res:
        y = y + r_ref[...].astype(jnp.float32)
    if relu:
        y = jnp.maximum(y, 0.0)
    o_ref[...] = y.astype(o_ref.dtype)


def _max3_kernel(a_ref, b_ref, c_ref, o_ref):
    o_ref[...] = jnp.maximum(jnp.maximum(a_ref[...], b_ref[...]), c_ref[...])


def _exp_neg_sq_sum_kernel(p_ref, l_ref, o_ref, acc_ref):
    i = pl.program_id(0)

    @pl.when(i == 0)
    def _():
        acc_ref[...] = jnp.zeros_like(acc_ref)

    d = p_ref[...].astype(jnp.float32) - l_ref[...].astype(jnp.float32)
    acc_ref[...] += jnp.sum(jnp.exp(-(d * d)), axis=0, keepdims=True)

    @pl.when(i == pl.num_programs(0) - 1)
    def _():
        o_ref[...] = acc_ref[...]


# ------------------------- wrappers -------------------------

def conv_matmul(a, b, bias, residual=None, relu=True):
    """(M, K) @ (K, N) + bias (+ residual) with optional ReLU.

    bf16 MXU operands, f32 accumulation/epilogue.  K stays full-width (single
    reduction step, no 128-padding of K); M is tiled on a parallel grid axis."""
    M, K = a.shape
    N = b.shape[1]
    a = a.astype(jnp.bfloat16)
    b = b.astype(jnp.bfloat16)
    bias2 = bias.reshape(1, N).astype(jnp.float32)

    tm = min(512, _round_up(M, 16))
    Mp = _round_up(M, tm)
    if Mp != M:
        a = jnp.pad(a, ((0, Mp - M), (0, 0)))

    args = [a, b, bias2]
    in_specs = [
        pl.BlockSpec((tm, K), lambda i: (i, 0)),
        pl.BlockSpec((K, N), lambda i: (0, 0)),
        pl.BlockSpec((1, N), lambda i: (0, 0)),
    ]
    has_res = residual is not None
    if has_res:
        r = residual.astype(jnp.bfloat16)
        if Mp != M:
            r = jnp.pad(r, ((0, Mp - M), (0, 0)))
        args.append(r)
        in_specs.append(pl.BlockSpec((tm, N), lambda i: (i, 0)))

    cost = pl.CostEstimate(
        flops=2 * Mp * K * N,
        transcendentals=0,
        bytes_accessed=2 * (Mp * K + K * N + Mp * N * (2 if has_res else 1)),
    )
    out = pl.pallas_call(
        functools.partial(_conv_mm_kernel, relu=relu, has_res=has_res),
        out_shape=jax.ShapeDtypeStruct((Mp, N), jnp.bfloat16),
        grid_spec=pltpu.PrefetchScalarGridSpec(
            num_scalar_prefetch=0,
            grid=(Mp // tm,),
            in_specs=in_specs,
            out_specs=pl.BlockSpec((tm, N), lambda i: (i, 0)),
        ),
        compiler_params=pltpu.CompilerParams(
            dimension_semantics=("parallel",),
            vmem_limit_bytes=32 * 1024 * 1024),
        cost_estimate=cost,
    )(*args)
    return out[:M] if Mp != M else out


def conv_bn(x, w, scale, bias, *, stride, pad, relu, residual=None):
    """Conv2d (no bias) + folded BatchNorm (+ ReLU, + optional fused residual)
    via im2col + Pallas MXU matmul.  x: NHWC, w: (KH, KW, Cin, Cout)."""
    N, H, W, C = x.shape
    KH, KW, _, Cout = w.shape
    w2 = (w * scale.reshape(1, 1, 1, Cout)).reshape(KH * KW * C, Cout)
    xp = jnp.pad(x, ((0, 0), (pad, pad), (pad, pad), (0, 0)))
    OH = (H + 2 * pad - KH) // stride + 1
    OW = (W + 2 * pad - KW) // stride + 1
    cols = [xp[:, i:i + (OH - 1) * stride + 1:stride,
               j:j + (OW - 1) * stride + 1:stride, :]
            for i in range(KH) for j in range(KW)]
    patches = jnp.concatenate(cols, axis=-1).reshape(N * OH * OW, KH * KW * C)
    res2 = None if residual is None else residual.reshape(N * OH * OW, Cout)
    y = conv_matmul(patches, w2, bias, residual=res2, relu=relu)
    return y.reshape(N, OH, OW, Cout)


def _lane_dense_2d(x):
    total = x.size
    if total % 128 == 0:
        return x.reshape(total // 128, 128)
    return x.reshape(-1, x.shape[-1])


def _elementwise_pallas(kernel, *arrays):
    """Apply an element-wise Pallas kernel over same-shape arrays,
    lane-dense and row-tiled."""
    shape = arrays[0].shape
    flats = [_lane_dense_2d(a) for a in arrays]
    R, C = flats[0].shape
    tr = min(1024, _round_up(R, 16))
    Rp = _round_up(R, tr)
    if Rp != R:
        flats = [jnp.pad(f, ((0, Rp - R), (0, 0))) for f in flats]
    out = pl.pallas_call(
        kernel,
        out_shape=jax.ShapeDtypeStruct((Rp, C), flats[0].dtype),
        grid_spec=pltpu.PrefetchScalarGridSpec(
            num_scalar_prefetch=0,
            grid=(Rp // tr,),
            in_specs=[pl.BlockSpec((tr, C), lambda i: (i, 0)) for _ in flats],
            out_specs=pl.BlockSpec((tr, C), lambda i: (i, 0)),
        ),
        compiler_params=pltpu.CompilerParams(
            dimension_semantics=("parallel",)),
    )(*flats)
    if Rp != R:
        out = out[:R]
    return out.reshape(shape)


def maxpool_3x3_s2_p1(x):
    """MaxPool2d(kernel=3, stride=2, padding=1) on NHWC input, done separably
    (3x1 max then 1x3 max) to limit HBM data expansion."""
    N, H, W, C = x.shape
    neg = float(jnp.finfo(x.dtype).min)
    OH = (H + 2 - 3) // 2 + 1
    OW = (W + 2 - 3) // 2 + 1
    xv = jnp.pad(x, ((0, 0), (1, 1), (0, 0), (0, 0)), constant_values=neg)
    rows = [xv[:, dh:dh + (OH - 1) * 2 + 1:2, :, :] for dh in range(3)]
    v = _elementwise_pallas(_max3_kernel, *rows)        # (N, OH, W, C)
    vh = jnp.pad(v, ((0, 0), (0, 0), (1, 1), (0, 0)), constant_values=neg)
    cols = [vh[:, :, dw:dw + (OW - 1) * 2 + 1:2, :] for dw in range(3)]
    return _elementwise_pallas(_max3_kernel, *cols)     # (N, OH, OW, C)


def feature_exp_neg_sq_mean(p, l):
    """mean(exp(-(p - l)^2)) over one feature map; reduction done in Pallas."""
    total = p.size
    pf = _lane_dense_2d(p)
    lf = _lane_dense_2d(l)
    R, C = pf.shape
    tr = min(1024, _round_up(R, 16))
    Rp = _round_up(R, tr)
    pad_elems = (Rp - R) * C
    if Rp != R:
        pf = jnp.pad(pf, ((0, Rp - R), (0, 0)))
        lf = jnp.pad(lf, ((0, Rp - R), (0, 0)))
    partial = pl.pallas_call(
        _exp_neg_sq_sum_kernel,
        out_shape=jax.ShapeDtypeStruct((1, C), jnp.float32),
        grid_spec=pltpu.PrefetchScalarGridSpec(
            num_scalar_prefetch=0,
            grid=(Rp // tr,),
            in_specs=[pl.BlockSpec((tr, C), lambda i: (i, 0)),
                      pl.BlockSpec((tr, C), lambda i: (i, 0))],
            out_specs=pl.BlockSpec((1, C), lambda i: (0, 0)),
            scratch_shapes=[pltpu.VMEM((1, C), jnp.float32)],
        ),
        compiler_params=pltpu.CompilerParams(
            dimension_semantics=("arbitrary",)),
    )(pf, lf)
    # padded positions have p == l == 0, each contributing exp(0) == 1
    return (jnp.sum(partial) - pad_elems) / total


# ------------------------- "network" (frozen, eval mode) -------------------------

def _folded_bn(c, idx, eps=1e-5):
    gamma = 1.0 + 0.01 * jnp.arange(c, dtype=jnp.float32)
    beta = 0.01 * jnp.arange(c, dtype=jnp.float32) * ((-1.0) ** idx)
    mean = jnp.zeros((c,), jnp.float32)
    var = jnp.ones((c,), jnp.float32)
    scale = gamma / jnp.sqrt(var + eps)
    bias = beta - mean * scale
    return scale, bias


def init_params(key):
    ks = jax.random.split(key, 3)

    def conv_w(k, kh, kw, cin, cout):
        fan_in = kh * kw * cin
        return (jax.random.normal(k, (kh, kw, cin, cout), jnp.float32)
                * jnp.sqrt(2.0 / fan_in))

    params = {
        'conv1_w': conv_w(ks[0], 7, 7, 3, 64),
        'bn1': _folded_bn(64, 0),
        'blocks': [],
    }
    for b in range(2):
        kb = jax.random.split(ks[1 + b], 2)
        params['blocks'].append({
            'conv1_w': conv_w(kb[0], 3, 3, 64, 64),
            'bn1': _folded_bn(64, 1),
            'conv2_w': conv_w(kb[1], 3, 3, 64, 64),
            'bn2': _folded_bn(64, 2),
        })
    return params


def resnet18_low_level(x_nhwc, params, do_maxpooling=True):
    # stem: conv1 7x7 stride 2 pad 3, BN, ReLU  -> low-level feature 1
    f1 = conv_bn(x_nhwc, params['conv1_w'], *params['bn1'],
                 stride=2, pad=3, relu=True)
    x = maxpool_3x3_s2_p1(f1) if do_maxpooling else f1
    # layer1: two residual BasicBlocks (64 -> 64, stride 1); residual add +
    # ReLU are fused into the second conv's matmul epilogue.
    for blk in params['blocks']:
        identity = x
        y = conv_bn(x, blk['conv1_w'], *blk['bn1'], stride=1, pad=1, relu=True)
        x = conv_bn(y, blk['conv2_w'], *blk['bn2'], stride=1, pad=1,
                    relu=True, residual=identity)
    f2 = x
    return [f1, f2]


class ImageNetCriteriumUnsupPretrain:
    """JAX/Pallas port (inputs are NCHW like PyTorch); the net is frozen."""

    def __init__(self, params, criterion=feature_exp_neg_sq_mean, weight=1.0,
                 key='img_crop', do_maxpooling=True):
        self.weight = weight
        self.key = key
        self.criterion = criterion
        self.do_maxpooling = do_maxpooling
        self.params = params
        self._loss_fn = jax.jit(self._loss)

    def _loss(self, pred, label):
        B = pred.shape[0]
        pred_nhwc = jnp.transpose(pred, (0, 2, 3, 1)).astype(jnp.bfloat16)
        label_nhwc = jnp.transpose(label, (0, 2, 3, 1)).astype(jnp.bfloat16)
        # single batched pass through the frozen feature extractor
        both = jnp.concatenate([pred_nhwc, label_nhwc], axis=0)
        feats = resnet18_low_level(both, self.params, self.do_maxpooling)
        losses = [self.criterion(f[:B], f[B:]) for f in feats]
        return self.weight * (sum(losses) / len(losses))

    def __call__(self, pred_dict, label_dict):
        return self._loss_fn(pred_dict[self.key], label_dict[self.key])


if __name__ == "__main__":
    root = jax.random.PRNGKey(0)
    k_in1, k_in2, k_par = jax.random.split(root, 3)

    B, C, H, W = 2, 3, 16, 16
    img_pred = jax.random.normal(k_in1, (B, C, H, W), jnp.float32)
    img_label = jax.random.normal(k_in2, (B, C, H, W), jnp.float32)

    params = init_params(k_par)
    criterion = ImageNetCriteriumUnsupPretrain(params, weight=1.0)

    loss = criterion({'img_crop': img_pred}, {'img_crop': img_label})
    loss = jax.block_until_ready(loss)
    assert jnp.isfinite(loss), "loss is not finite"
    print("KERNEL_OK")
</pallas_src>

<mosaic_0001>
module attributes {stable_mosaic.version = 11 : i64} {
  func.func @_max3_kernel(%arg0: i32, %arg1: memref<64x128xbf16, #tpu.memory_space<vmem>>, %arg2: memref<64x128xbf16, #tpu.memory_space<vmem>>, %arg3: memref<64x128xbf16, #tpu.memory_space<vmem>>, %arg4: memref<64x128xbf16, #tpu.memory_space<vmem>>) attributes {dimension_semantics = [#tpu.dimension_semantics<parallel>], iteration_bounds = array<i64: 1>, scalar_prefetch = 0 : i64, scratch_operands = 0 : i64, tpu.core_type = #tpu.core_type<tc>, window_params = [{transform_indices = @transform_0, window_bounds = array<i64: 64, 128>}, {transform_indices = @transform_1, window_bounds = array<i64: 64, 128>}, {transform_indices = @transform_2, window_bounds = array<i64: 64, 128>}, {transform_indices = @transform_3, window_bounds = array<i64: 64, 128>}]} {
    %c0 = arith.constant 0 : index
    %c0_0 = arith.constant 0 : index
    %0 = vector.load %arg1[%c0, %c0_0] : memref<64x128xbf16, #tpu.memory_space<vmem>>, vector<64x128xbf16>
    %c0_1 = arith.constant 0 : index
    %c0_2 = arith.constant 0 : index
    %1 = vector.load %arg2[%c0_1, %c0_2] : memref<64x128xbf16, #tpu.memory_space<vmem>>, vector<64x128xbf16>
    %2 = arith.maximumf %0, %1 : vector<64x128xbf16>
    %c0_3 = arith.constant 0 : index
    %c0_4 = arith.constant 0 : index
    %3 = vector.load %arg3[%c0_3, %c0_4] : memref<64x128xbf16, #tpu.memory_space<vmem>>, vector<64x128xbf16>
    %4 = arith.maximumf %2, %3 : vector<64x128xbf16>
    %c0_5 = arith.constant 0 : index
    %c0_6 = arith.constant 0 : index
    %5 = vector.load %arg4[%c0_5, %c0_6] : memref<64x128xbf16, #tpu.memory_space<vmem>>, vector<64x128xbf16>
    tpu.vector_store %arg4[%c0_5, %c0_6], %4 {strides = array<i32>} : memref<64x128xbf16, #tpu.memory_space<vmem>>, vector<64x128xbf16>,
    return
  }
  func.func @transform_0(%arg0: i32) -> (i32, i32) {
    %c0_i32 = arith.constant 0 : i32
    %c0_i32_0 = arith.constant 0 : i32
    return %arg0, %c0_i32 : i32, i32
  }
  func.func @transform_1(%arg0: i32) -> (i32, i32) {
    %c0_i32 = arith.constant 0 : i32
    %c0_i32_0 = arith.constant 0 : i32
    return %arg0, %c0_i32 : i32, i32
  }
  func.func @transform_2(%arg0: i32) -> (i32, i32) {
    %c0_i32 = arith.constant 0 : i32
    %c0_i32_0 = arith.constant 0 : i32
    return %arg0, %c0_i32 : i32, i32
  }
  func.func @transform_3(%arg0: i32) -> (i32, i32) {
    %c0_i32 = arith.constant 0 : i32
    %c0_i32_0 = arith.constant 0 : i32
    return %arg0, %c0_i32 : i32, i32
  }
}

module attributes {stable_mosaic.version = 11 : i64} {
  func.func @_conv_mm_kernel(%arg0: i32, %arg1: memref<256x147xbf16, #tpu.memory_space<vmem>>, %arg2: memref<147x64xbf16, #tpu.memory_space<vmem>>, %arg3: memref<1x64xf32, #tpu.memory_space<vmem>>, %arg4: memref<256x64xbf16, #tpu.memory_space<vmem>>) attributes {dimension_semantics = [#tpu.dimension_semantics<parallel>], iteration_bounds = array<i64: 1>, scalar_prefetch = 0 : i64, scratch_operands = 0 : i64, tpu.core_type = #tpu.core_type<tc>, window_params = [{transform_indices = @transform_0, window_bounds = array<i64: 256, 147>}, {pipeline_mode = #tpu.pipeline_mode<synchronous>, transform_indices = @transform_1, window_bounds = array<i64: 147, 64>}, {pipeline_mode = #tpu.pipeline_mode<synchronous>, transform_indices = @transform_2, window_bounds = array<i64: 1, 64>}, {transform_indices = @transform_3, window_bounds = array<i64: 256, 64>}]} {
    %c0 = arith.constant 0 : index
    %c0_0 = arith.constant 0 : index
    %0 = vector.load %arg1[%c0, %c0_0] : memref<256x147xbf16, #tpu.memory_space<vmem>>, vector<256x147xbf16>
    %c0_1 = arith.constant 0 : index
    %c0_2 = arith.constant 0 : index
    %1 = vector.load %arg2[%c0_1, %c0_2] : memref<147x64xbf16, #tpu.memory_space<vmem>>, vector<147x64xbf16>
    %cst = arith.constant dense<0.000000e+00> : vector<256x64xf32>
    %2 = tpu.matmul %0, %1, %cst {dimension_numbers = #tpu.dot_dimension_numbers<[1], [0], [0], [1], [0, 0, 1, 1], [], []>} : vector<256x147xbf16>, vector<147x64xbf16>, vector<256x64xf32> -> vector<256x64xf32>
    %c0_3 = arith.constant 0 : index
    %c0_4 = arith.constant 0 : index
    %3 = vector.load %arg3[%c0_3, %c0_4] : memref<1x64xf32, #tpu.memory_space<vmem>>, vector<1x64xf32>
    %4 = vector.broadcast %3 : vector<1x64xf32> to vector<256x64xf32>
    %5 = arith.addf %2, %4 : vector<256x64xf32>
    %cst_5 = arith.constant 0.000000e+00 : f32
    %6 = vector.broadcast %cst_5 : f32 to vector<256x64xf32>
    %7 = arith.maximumf %5, %6 : vector<256x64xf32>
    %8 = arith.truncf %7 : vector<256x64xf32> to vector<256x64xbf16>
    %c0_6 = arith.constant 0 : index
    %c0_7 = arith.constant 0 : index
    %9 = vector.load %arg4[%c0_6, %c0_7] : memref<256x64xbf16, #tpu.memory_space<vmem>>, vector<256x64xbf16>
    tpu.vector_store %arg4[%c0_6, %c0_7], %8 {strides = array<i32>} : memref<256x64xbf16, #tpu.memory_space<vmem>>, vector<256x64xbf16>,
    return
  }
  func.func @transform_0(%arg0: i32) -> (i32, i32) {
    %c0_i32 = arith.constant 0 : i32
    %c0_i32_0 = arith.constant 0 : i32
    return %arg0, %c0_i32 : i32, i32
  }
  func.func @transform_1(%arg0: i32) -> (i32, i32) {
    %c0_i32 = arith.constant 0 : i32
    %c0_i32_0 = arith.constant 0 : i32
    %c0_i32_1 = arith.constant 0 : i32
    return %c0_i32, %c0_i32_0 : i32, i32
  }
  func.func @transform_2(%arg0: i32) -> (i32, i32) {
    %c0_i32 = arith.constant 0 : i32
    %c0_i32_0 = arith.constant 0 : i32
    %c0_i32_1 = arith.constant 0 : i32
    return %c0_i32, %c0_i32_0 : i32, i32
  }
  func.func @transform_3(%arg0: i32) -> (i32, i32) {
    %c0_i32 = arith.constant 0 : i32
    %c0_i32_0 = arith.constant 0 : i32
    return %arg0, %c0_i32 : i32, i32
  }
}

module attributes {stable_mosaic.version = 11 : i64} {
  func.func @_exp_neg_sq_sum_kernel(%arg0: i32, %arg1: memref<64x128xbf16, #tpu.memory_space<vmem>>, %arg2: memref<64x128xbf16, #tpu.memory_space<vmem>>, %arg3: memref<1x128xf32, #tpu.memory_space<vmem>>, %arg4: memref<1x128xf32, #tpu.memory_space<vmem>>) attributes {dimension_semantics = [#tpu.dimension_semantics<arbitrary>], iteration_bounds = array<i64: 1>, scalar_prefetch = 0 : i64, scratch_operands = 1 : i64, tpu.core_type = #tpu.core_type<tc>, window_params = [{transform_indices = @transform_0, window_bounds = array<i64: 64, 128>}, {transform_indices = @transform_1, window_bounds = array<i64: 64, 128>}, {pipeline_mode = #tpu.pipeline_mode<synchronous>, transform_indices = @transform_2, window_bounds = array<i64: 1, 128>}]} {
    %c0_i32 = arith.constant 0 : i32
    %0 = arith.cmpi eq, %arg0, %c0_i32 : i32
    %1 = arith.extui %0 : i1 to i32
    %c0_i32_0 = arith.constant 0 : i32
    %2 = arith.cmpi ne, %1, %c0_i32_0 : i32
    scf.if %2 {
      %cst_11 = arith.constant 0.000000e+00 : f32
      %20 = vector.broadcast %cst_11 : f32 to vector<1x128xf32>
      %c0_12 = arith.constant 0 : index
      %c0_13 = arith.constant 0 : index
      %21 = vector.load %arg4[%c0_12, %c0_13] : memref<1x128xf32, #tpu.memory_space<vmem>>, vector<1x128xf32>
      tpu.vector_store %arg4[%c0_12, %c0_13], %20 {strides = array<i32>} : memref<1x128xf32, #tpu.memory_space<vmem>>, vector<1x128xf32>,
    } else {
    }
    %c0 = arith.constant 0 : index
    %c0_1 = arith.constant 0 : index
    %3 = vector.load %arg1[%c0, %c0_1] : memref<64x128xbf16, #tpu.memory_space<vmem>>, vector<64x128xbf16>
    %4 = arith.extf %3 : vector<64x128xbf16> to vector<64x128xf32>
    %c0_2 = arith.constant 0 : index
    %c0_3 = arith.constant 0 : index
    %5 = vector.load %arg2[%c0_2, %c0_3] : memref<64x128xbf16, #tpu.memory_space<vmem>>, vector<64x128xbf16>
    %6 = arith.extf %5 : vector<64x128xbf16> to vector<64x128xf32>
    %7 = arith.subf %4, %6 : vector<64x128xf32>
    %c0_4 = arith.constant 0 : index
    %c0_5 = arith.constant 0 : index
    %8 = vector.load %arg4[%c0_4, %c0_5] : memref<1x128xf32, #tpu.memory_space<vmem>>, vector<1x128xf32>
    %9 = arith.mulf %7, %7 : vector<64x128xf32>
    %cst = arith.constant 0.000000e+00 : f32
    %10 = vector.broadcast %cst : f32 to vector<64x128xf32>
    %11 = arith.subf %10, %9 : vector<64x128xf32>
    %12 = math.exp %11 : vector<64x128xf32>
    %cst_6 = arith.constant dense<0.000000e+00> : vector<128xf32>
    %13 = vector.multi_reduction <add>, %12, %cst_6 [0] : vector<64x128xf32> to vector<128xf32>
    %14 = vector.shape_cast %13 : vector<128xf32> to vector<1x128xf32>
    %15 = arith.addf %8, %14 : vector<1x128xf32>
    %c0_7 = arith.constant 0 : index
    %c0_8 = arith.constant 0 : index
    %16 = vector.load %arg4[%c0_7, %c0_8] : memref<1x128xf32, #tpu.memory_space<vmem>>, vector<1x128xf32>
    tpu.vector_store %arg4[%c0_7, %c0_8], %15 {strides = array<i32>} : memref<1x128xf32, #tpu.memory_space<vmem>>, vector<1x128xf32>,
    %c0_i32_9 = arith.constant 0 : i32
    %17 = arith.cmpi eq, %arg0, %c0_i32_9 : i32
    %18 = arith.extui %17 : i1 to i32
    %c0_i32_10 = arith.constant 0 : i32
    %19 = arith.cmpi ne, %18, %c0_i32_10 : i32
    scf.if %19 {
      %c0_11 = arith.constant 0 : index
      %c0_12 = arith.constant 0 : index
      %20 = vector.load %arg4[%c0_11, %c0_12] : memref<1x128xf32, #tpu.memory_space<vmem>>, vector<1x128xf32>
      %c0_13 = arith.constant 0 : index
      %c0_14 = arith.constant 0 : index
      %21 = vector.load %arg3[%c0_13, %c0_14] : memref<1x128xf32, #tpu.memory_space<vmem>>, vector<1x128xf32>
      tpu.vector_store %arg3[%c0_13, %c0_14], %20 {strides = array<i32>} : memref<1x128xf32, #tpu.memory_space<vmem>>, vector<1x128xf32>,
    } else {
    }
    return
  }
  func.func @transform_0(%arg0: i32) -> (i32, i32) {
    %c0_i32 = arith.constant 0 : i32
    %c0_i32_0 = arith.constant 0 : i32
    return %arg0, %c0_i32 : i32, i32
  }
  func.func @transform_1(%arg0: i32) -> (i32, i32) {
    %c0_i32 = arith.constant 0 : i32
    %c0_i32_0 = arith.constant 0 : i32
    return %arg0, %c0_i32 : i32, i32
  }
  func.func @transform_2(%arg0: i32) -> (i32, i32) {
    %c0_i32 = arith.constant 0 : i32
    %c0_i32_0 = arith.constant 0 : i32
    %c0_i32_1 = arith.constant 0 : i32
    return %c0_i32, %c0_i32_0 : i32, i32
  }
}

module attributes {stable_mosaic.version = 11 : i64} {
  func.func @_conv_mm_kernel(%arg0: i32, %arg1: memref<64x576xbf16, #tpu.memory_space<vmem>>, %arg2: memref<576x64xbf16, #tpu.memory_space<vmem>>, %arg3: memref<1x64xf32, #tpu.memory_space<vmem>>, %arg4: memref<64x64xbf16, #tpu.memory_space<vmem>>) attributes {dimension_semantics = [#tpu.dimension_semantics<parallel>], iteration_bounds = array<i64: 1>, scalar_prefetch = 0 : i64, scratch_operands = 0 : i64, tpu.core_type = #tpu.core_type<tc>, window_params = [{transform_indices = @transform_0, window_bounds = array<i64: 64, 576>}, {pipeline_mode = #tpu.pipeline_mode<synchronous>, transform_indices = @transform_1, window_bounds = array<i64: 576, 64>}, {pipeline_mode = #tpu.pipeline_mode<synchronous>, transform_indices = @transform_2, window_bounds = array<i64: 1, 64>}, {transform_indices = @transform_3, window_bounds = array<i64: 64, 64>}]} {
    %c0 = arith.constant 0 : index
    %c0_0 = arith.constant 0 : index
    %0 = vector.load %arg1[%c0, %c0_0] : memref<64x576xbf16, #tpu.memory_space<vmem>>, vector<64x576xbf16>
    %c0_1 = arith.constant 0 : index
    %c0_2 = arith.constant 0 : index
    %1 = vector.load %arg2[%c0_1, %c0_2] : memref<576x64xbf16, #tpu.memory_space<vmem>>, vector<576x64xbf16>
    %cst = arith.constant dense<0.000000e+00> : vector<64x64xf32>
    %2 = tpu.matmul %0, %1, %cst {dimension_numbers = #tpu.dot_dimension_numbers<[1], [0], [0], [1], [0, 0, 1, 1], [], []>} : vector<64x576xbf16>, vector<576x64xbf16>, vector<64x64xf32> -> vector<64x64xf32>
    %c0_3 = arith.constant 0 : index
    %c0_4 = arith.constant 0 : index
    %3 = vector.load %arg3[%c0_3, %c0_4] : memref<1x64xf32, #tpu.memory_space<vmem>>, vector<1x64xf32>
    %4 = vector.broadcast %3 : vector<1x64xf32> to vector<64x64xf32>
    %5 = arith.addf %2, %4 : vector<64x64xf32>
    %cst_5 = arith.constant 0.000000e+00 : f32
    %6 = vector.broadcast %cst_5 : f32 to vector<64x64xf32>
    %7 = arith.maximumf %5, %6 : vector<64x64xf32>
    %8 = arith.truncf %7 : vector<64x64xf32> to vector<64x64xbf16>
    %c0_6 = arith.constant 0 : index
    %c0_7 = arith.constant 0 : index
    %9 = vector.load %arg4[%c0_6, %c0_7] : memref<64x64xbf16, #tpu.memory_space<vmem>>, vector<64x64xbf16>
    tpu.vector_store %arg4[%c0_6, %c0_7], %8 {strides = array<i32>} : memref<64x64xbf16, #tpu.memory_space<vmem>>, vector<64x64xbf16>,
    return
  }
  func.func @transform_0(%arg0: i32) -> (i32, i32) {
    %c0_i32 = arith.constant 0 : i32
    %c0_i32_0 = arith.constant 0 : i32
    return %arg0, %c0_i32 : i32, i32
  }
  func.func @transform_1(%arg0: i32) -> (i32, i32) {
    %c0_i32 = arith.constant 0 : i32
    %c0_i32_0 = arith.constant 0 : i32
    %c0_i32_1 = arith.constant 0 : i32
    return %c0_i32, %c0_i32_0 : i32, i32
  }
  func.func @transform_2(%arg0: i32) -> (i32, i32) {
    %c0_i32 = arith.constant 0 : i32
    %c0_i32_0 = arith.constant 0 : i32
    %c0_i32_1 = arith.constant 0 : i32
    return %c0_i32, %c0_i32_0 : i32, i32
  }
  func.func @transform_3(%arg0: i32) -> (i32, i32) {
    %c0_i32 = arith.constant 0 : i32
    %c0_i32_0 = arith.constant 0 : i32
    return %arg0, %c0_i32 : i32, i32
  }
}

module attributes {stable_mosaic.version = 11 : i64} {
  func.func @_max3_kernel(%arg0: i32, %arg1: memref<32x128xbf16, #tpu.memory_space<vmem>>, %arg2: memref<32x128xbf16, #tpu.memory_space<vmem>>, %arg3: memref<32x128xbf16, #tpu.memory_space<vmem>>, %arg4: memref<32x128xbf16, #tpu.memory_space<vmem>>) attributes {dimension_semantics = [#tpu.dimension_semantics<parallel>], iteration_bounds = array<i64: 1>, scalar_prefetch = 0 : i64, scratch_operands = 0 : i64, tpu.core_type = #tpu.core_type<tc>, window_params = [{transform_indices = @transform_0, window_bounds = array<i64: 32, 128>}, {transform_indices = @transform_1, window_bounds = array<i64: 32, 128>}, {transform_indices = @transform_2, window_bounds = array<i64: 32, 128>}, {transform_indices = @transform_3, window_bounds = array<i64: 32, 128>}]} {
    %c0 = arith.constant 0 : index
    %c0_0 = arith.constant 0 : index
    %0 = vector.load %arg1[%c0, %c0_0] : memref<32x128xbf16, #tpu.memory_space<vmem>>, vector<32x128xbf16>
    %c0_1 = arith.constant 0 : index
    %c0_2 = arith.constant 0 : index
    %1 = vector.load %arg2[%c0_1, %c0_2] : memref<32x128xbf16, #tpu.memory_space<vmem>>, vector<32x128xbf16>
    %2 = arith.maximumf %0, %1 : vector<32x128xbf16>
    %c0_3 = arith.constant 0 : index
    %c0_4 = arith.constant 0 : index
    %3 = vector.load %arg3[%c0_3, %c0_4] : memref<32x128xbf16, #tpu.memory_space<vmem>>, vector<32x128xbf16>
    %4 = arith.maximumf %2, %3 : vector<32x128xbf16>
    %c0_5 = arith.constant 0 : index
    %c0_6 = arith.constant 0 : index
    %5 = vector.load %arg4[%c0_5, %c0_6] : memref<32x128xbf16, #tpu.memory_space<vmem>>, vector<32x128xbf16>
    tpu.vector_store %arg4[%c0_5, %c0_6], %4 {strides = array<i32>} : memref<32x128xbf16, #tpu.memory_space<vmem>>, vector<32x128xbf16>,
    return
  }
  func.func @transform_0(%arg0: i32) -> (i32, i32) {
    %c0_i32 = arith.constant 0 : i32
    %c0_i32_0 = arith.constant 0 : i32
    return %arg0, %c0_i32 : i32, i32
  }
  func.func @transform_1(%arg0: i32) -> (i32, i32) {
    %c0_i32 = arith.constant 0 : i32
    %c0_i32_0 = arith.constant 0 : i32
    return %arg0, %c0_i32 : i32, i32
  }
  func.func @transform_2(%arg0: i32) -> (i32, i32) {
    %c0_i32 = arith.constant 0 : i32
    %c0_i32_0 = arith.constant 0 : i32
    return %arg0, %c0_i32 : i32, i32
  }
  func.func @transform_3(%arg0: i32) -> (i32, i32) {
    %c0_i32 = arith.constant 0 : i32
    %c0_i32_0 = arith.constant 0 : i32
    return %arg0, %c0_i32 : i32, i32
  }
}

module attributes {stable_mosaic.version = 11 : i64} {
  func.func @_conv_mm_kernel(%arg0: i32, %arg1: memref<64x576xbf16, #tpu.memory_space<vmem>>, %arg2: memref<576x64xbf16, #tpu.memory_space<vmem>>, %arg3: memref<1x64xf32, #tpu.memory_space<vmem>>, %arg4: memref<64x64xbf16, #tpu.memory_space<vmem>>, %arg5: memref<64x64xbf16, #tpu.memory_space<vmem>>) attributes {dimension_semantics = [#tpu.dimension_semantics<parallel>], iteration_bounds = array<i64: 1>, scalar_prefetch = 0 : i64, scratch_operands = 0 : i64, tpu.core_type = #tpu.core_type<tc>, window_params = [{transform_indices = @transform_0, window_bounds = array<i64: 64, 576>}, {pipeline_mode = #tpu.pipeline_mode<synchronous>, transform_indices = @transform_1, window_bounds = array<i64: 576, 64>}, {pipeline_mode = #tpu.pipeline_mode<synchronous>, transform_indices = @transform_2, window_bounds = array<i64: 1, 64>}, {transform_indices = @transform_3, window_bounds = array<i64: 64, 64>}, {transform_indices = @transform_4, window_bounds = array<i64: 64, 64>}]} {
    %c0 = arith.constant 0 : index
    %c0_0 = arith.constant 0 : index
    %0 = vector.load %arg1[%c0, %c0_0] : memref<64x576xbf16, #tpu.memory_space<vmem>>, vector<64x576xbf16>
    %c0_1 = arith.constant 0 : index
    %c0_2 = arith.constant 0 : index
    %1 = vector.load %arg2[%c0_1, %c0_2] : memref<576x64xbf16, #tpu.memory_space<vmem>>, vector<576x64xbf16>
    %cst = arith.constant dense<0.000000e+00> : vector<64x64xf32>
    %2 = tpu.matmul %0, %1, %cst {dimension_numbers = #tpu.dot_dimension_numbers<[1], [0], [0], [1], [0, 0, 1, 1], [], []>} : vector<64x576xbf16>, vector<576x64xbf16>, vector<64x64xf32> -> vector<64x64xf32>
    %c0_3 = arith.constant 0 : index
    %c0_4 = arith.constant 0 : index
    %3 = vector.load %arg3[%c0_3, %c0_4] : memref<1x64xf32, #tpu.memory_space<vmem>>, vector<1x64xf32>
    %4 = vector.broadcast %3 : vector<1x64xf32> to vector<64x64xf32>
    %5 = arith.addf %2, %4 : vector<64x64xf32>
    %c0_5 = arith.constant 0 : index
    %c0_6 = arith.constant 0 : index
    %6 = vector.load %arg4[%c0_5, %c0_6] : memref<64x64xbf16, #tpu.memory_space<vmem>>, vector<64x64xbf16>
    %7 = arith.extf %6 : vector<64x64xbf16> to vector<64x64xf32>
    %8 = arith.addf %5, %7 : vector<64x64xf32>
    %cst_7 = arith.constant 0.000000e+00 : f32
    %9 = vector.broadcast %cst_7 : f32 to vector<64x64xf32>
    %10 = arith.maximumf %8, %9 : vector<64x64xf32>
    %11 = arith.truncf %10 : vector<64x64xf32> to vector<64x64xbf16>
    %c0_8 = arith.constant 0 : index
    %c0_9 = arith.constant 0 : index
    %12 = vector.load %arg5[%c0_8, %c0_9] : memref<64x64xbf16, #tpu.memory_space<vmem>>, vector<64x64xbf16>
    tpu.vector_store %arg5[%c0_8, %c0_9], %11 {strides = array<i32>} : memref<64x64xbf16, #tpu.memory_space<vmem>>, vector<64x64xbf16>,
    return
  }
  func.func @transform_0(%arg0: i32) -> (i32, i32) {
    %c0_i32 = arith.constant 0 : i32
    %c0_i32_0 = arith.constant 0 : i32
    return %arg0, %c0_i32 : i32, i32
  }
  func.func @transform_1(%arg0: i32) -> (i32, i32) {
    %c0_i32 = arith.constant 0 : i32
    %c0_i32_0 = arith.constant 0 : i32
    %c0_i32_1 = arith.constant 0 : i32
    return %c0_i32, %c0_i32_0 : i32, i32
  }
  func.func @transform_2(%arg0: i32) -> (i32, i32) {
    %c0_i32 = arith.constant 0 : i32
    %c0_i32_0 = arith.constant 0 : i32
    %c0_i32_1 = arith.constant 0 : i32
    return %c0_i32, %c0_i32_0 : i32, i32
  }
  func.func @transform_3(%arg0: i32) -> (i32, i32) {
    %c0_i32 = arith.constant 0 : i32
    %c0_i32_0 = arith.constant 0 : i32
    return %arg0, %c0_i32 : i32, i32
  }
  func.func @transform_4(%arg0: i32) -> (i32, i32) {
    %c0_i32 = arith.constant 0 : i32
    %c0_i32_0 = arith.constant 0 : i32
    return %arg0, %c0_i32 : i32, i32
  }
}

module attributes {stable_mosaic.version = 11 : i64} {
  func.func @_exp_neg_sq_sum_kernel(%arg0: i32, %arg1: memref<16x128xbf16, #tpu.memory_space<vmem>>, %arg2: memref<16x128xbf16, #tpu.memory_space<vmem>>, %arg3: memref<1x128xf32, #tpu.memory_space<vmem>>, %arg4: memref<1x128xf32, #tpu.memory_space<vmem>>) attributes {dimension_semantics = [#tpu.dimension_semantics<arbitrary>], iteration_bounds = array<i64: 1>, scalar_prefetch = 0 : i64, scratch_operands = 1 : i64, tpu.core_type = #tpu.core_type<tc>, window_params = [{transform_indices = @transform_0, window_bounds = array<i64: 16, 128>}, {transform_indices = @transform_1, window_bounds = array<i64: 16, 128>}, {pipeline_mode = #tpu.pipeline_mode<synchronous>, transform_indices = @transform_2, window_bounds = array<i64: 1, 128>}]} {
    %c0_i32 = arith.constant 0 : i32
    %0 = arith.cmpi eq, %arg0, %c0_i32 : i32
    %1 = arith.extui %0 : i1 to i32
    %c0_i32_0 = arith.constant 0 : i32
    %2 = arith.cmpi ne, %1, %c0_i32_0 : i32
    scf.if %2 {
      %cst_11 = arith.constant 0.000000e+00 : f32
      %20 = vector.broadcast %cst_11 : f32 to vector<1x128xf32>
      %c0_12 = arith.constant 0 : index
      %c0_13 = arith.constant 0 : index
      %21 = vector.load %arg4[%c0_12, %c0_13] : memref<1x128xf32, #tpu.memory_space<vmem>>, vector<1x128xf32>
      tpu.vector_store %arg4[%c0_12, %c0_13], %20 {strides = array<i32>} : memref<1x128xf32, #tpu.memory_space<vmem>>, vector<1x128xf32>,
    } else {
    }
    %c0 = arith.constant 0 : index
    %c0_1 = arith.constant 0 : index
    %3 = vector.load %arg1[%c0, %c0_1] : memref<16x128xbf16, #tpu.memory_space<vmem>>, vector<16x128xbf16>
    %4 = arith.extf %3 : vector<16x128xbf16> to vector<16x128xf32>
    %c0_2 = arith.constant 0 : index
    %c0_3 = arith.constant 0 : index
    %5 = vector.load %arg2[%c0_2, %c0_3] : memref<16x128xbf16, #tpu.memory_space<vmem>>, vector<16x128xbf16>
    %6 = arith.extf %5 : vector<16x128xbf16> to vector<16x128xf32>
    %7 = arith.subf %4, %6 : vector<16x128xf32>
    %c0_4 = arith.constant 0 : index
    %c0_5 = arith.constant 0 : index
    %8 = vector.load %arg4[%c0_4, %c0_5] : memref<1x128xf32, #tpu.memory_space<vmem>>, vector<1x128xf32>
    %9 = arith.mulf %7, %7 : vector<16x128xf32>
    %cst = arith.constant 0.000000e+00 : f32
    %10 = vector.broadcast %cst : f32 to vector<16x128xf32>
    %11 = arith.subf %10, %9 : vector<16x128xf32>
    %12 = math.exp %11 : vector<16x128xf32>
    %cst_6 = arith.constant dense<0.000000e+00> : vector<128xf32>
    %13 = vector.multi_reduction <add>, %12, %cst_6 [0] : vector<16x128xf32> to vector<128xf32>
    %14 = vector.shape_cast %13 : vector<128xf32> to vector<1x128xf32>
    %15 = arith.addf %8, %14 : vector<1x128xf32>
    %c0_7 = arith.constant 0 : index
    %c0_8 = arith.constant 0 : index
    %16 = vector.load %arg4[%c0_7, %c0_8] : memref<1x128xf32, #tpu.memory_space<vmem>>, vector<1x128xf32>
    tpu.vector_store %arg4[%c0_7, %c0_8], %15 {strides = array<i32>} : memref<1x128xf32, #tpu.memory_space<vmem>>, vector<1x128xf32>,
    %c0_i32_9 = arith.constant 0 : i32
    %17 = arith.cmpi eq, %arg0, %c0_i32_9 : i32
    %18 = arith.extui %17 : i1 to i32
    %c0_i32_10 = arith.constant 0 : i32
    %19 = arith.cmpi ne, %18, %c0_i32_10 : i32
    scf.if %19 {
      %c0_11 = arith.constant 0 : index
      %c0_12 = arith.constant 0 : index
      %20 = vector.load %arg4[%c0_11, %c0_12] : memref<1x128xf32, #tpu.memory_space<vmem>>, vector<1x128xf32>
      %c0_13 = arith.constant 0 : index
      %c0_14 = arith.constant 0 : index
      %21 = vector.load %arg3[%c0_13, %c0_14] : memref<1x128xf32, #tpu.memory_space<vmem>>, vector<1x128xf32>
      tpu.vector_store %arg3[%c0_13, %c0_14], %20 {strides = array<i32>} : memref<1x128xf32, #tpu.memory_space<vmem>>, vector<1x128xf32>,
    } else {
    }
    return
  }
  func.func @transform_0(%arg0: i32) -> (i32, i32) {
    %c0_i32 = arith.constant 0 : i32
    %c0_i32_0 = arith.constant 0 : i32
    return %arg0, %c0_i32 : i32, i32
  }
  func.func @transform_1(%arg0: i32) -> (i32, i32) {
    %c0_i32 = arith.constant 0 : i32
    %c0_i32_0 = arith.constant 0 : i32
    return %arg0, %c0_i32 : i32, i32
  }
  func.func @transform_2(%arg0: i32) -> (i32, i32) {
    %c0_i32 = arith.constant 0 : i32
    %c0_i32_0 = arith.constant 0 : i32
    %c0_i32_1 = arith.constant 0 : i32
    return %c0_i32, %c0_i32_0 : i32, i32
  }
}

</mosaic_0001>

<llo_original>
// kernel: _loss.16
$region0: #{_loss.16}
  #allocation0 [shape = 'u32[]', space=smem, size = 0x4, offset = 0x4, fixed_abs, tag = 'smem constant byte address 0x4 - core index']
  #allocation1 [shape = 'u32[144,128]{1,0:T(1,128)}', space=vmem, size = 0x12000, scoped, tag = 'internal scratch']
  #allocation2 [shape = 'f32[1,128]{1,0:T(1,128)}', space=vmem, size = 0x200, scoped, tag = 'scratch operand']
  %s0 = inlined_call_operand.vmem [shape: bf16[64,128], index: 0, kind: input, shape index: {}]
  %s1 = inlined_call_operand.vmem [shape: bf16[64,128], index: 1, kind: input, shape index: {}]
  %s2 = inlined_call_operand.vmem [shape: f32[1,128], index: 2, kind: output, shape index: {}]
  %s3 = sld [smem:[#allocation0]]
  $region26: #{_loss.16} parent=0
    _
  %s5 = ssub.s32 1, %s3
  %s6 = scalar_select 0, %s5, %s3
  // Predicated region
  $region2: #{_loss.16} parent=0 // pred_check
    _
  $region3: #{_loss.16} parent=0 // pred_check_branch
    %8 = sbr.rel (0) target = $region5
  $region4: #{_loss.16} parent=0 // pred_region
    _
  $region5: #{_loss.16} parent=0 // pred_fallthru
    _
  // Predicated region
  $region6: #{_loss.16} parent=0 // pred_check
    _
  $region7: #{_loss.16} parent=0 // pred_check_branch
    %10 = sbr.rel (0) target = $region9
  $region8: #{_loss.16} parent=0 // pred_region
    _
  $region9: #{_loss.16} parent=0 // pred_fallthru
    _
  %p11 = scmp.eq.s32.totalorder 0, 0
  // Predicated region
  $region10: #{_loss.16} parent=0 // pred_check
    %p12 = pneg %p11
  $region11: #{_loss.16} parent=0 // pred_check_branch
    %14 = sbr.rel (%p12) target = $region13
  $region12: #{_loss.16} parent=0 // pred_region
    %15 = vst [vmem:[#allocation2] sm:$0x1] 0.0
  $region13: #{_loss.16} parent=0 // pred_fallthru
    _
  %v16 = vld [vmem:[%s0] sm:$0xf]
  %v17 = vld [vmem:[%s0 + $0x4] sm:$0xf]
  %v18 = vld [vmem:[%s0 + $0x8] sm:$0xf]
  %v19 = vld [vmem:[%s0 + $0xc] sm:$0xf]
  %v20 = vld [vmem:[%s0 + $0x10] sm:$0xf]
  %v21 = vld [vmem:[%s0 + $0x14] sm:$0xf]
  %v22 = vld [vmem:[%s0 + $0x18] sm:$0xf]
  %v23 = vld [vmem:[%s0 + $0x1c] sm:$0xf]
  %v24 = vunpack.c.l.bf16 %v16
  %v25 = vunpack.c.l.bf16 %v17
  %v26 = vunpack.c.l.bf16 %v18
  %v27 = vunpack.c.l.bf16 %v19
  %v28 = vunpack.c.l.bf16 %v20
  %v29 = vunpack.c.l.bf16 %v21
  %v30 = vunpack.c.l.bf16 %v22
  %v31 = vunpack.c.l.bf16 %v23
  %v32 = vld [vmem:[%s1] sm:$0xf]
  %v33 = vld [vmem:[%s1 + $0x4] sm:$0xf]
  %v34 = vld [vmem:[%s1 + $0x8] sm:$0xf]
  %v35 = vld [vmem:[%s1 + $0xc] sm:$0xf]
  %v36 = vld [vmem:[%s1 + $0x10] sm:$0xf]
  %v37 = vld [vmem:[%s1 + $0x14] sm:$0xf]
  %v38 = vld [vmem:[%s1 + $0x18] sm:$0xf]
  %v39 = vld [vmem:[%s1 + $0x1c] sm:$0xf]
  %v40 = vunpack.c.l.bf16 %v32
  %v41 = vunpack.c.l.bf16 %v33
  %v42 = vunpack.c.l.bf16 %v34
  %v43 = vunpack.c.l.bf16 %v35
  %v44 = vunpack.c.l.bf16 %v36
  %v45 = vunpack.c.l.bf16 %v37
  %v46 = vunpack.c.l.bf16 %v38
  %v47 = vunpack.c.l.bf16 %v39
  %v48 = vsub.f32 %v24, %v40
  %v49 = vsub.f32 %v25, %v41
  %v50 = vsub.f32 %v26, %v42
  %v51 = vsub.f32 %v27, %v43
  %v52 = vsub.f32 %v28, %v44
  %v53 = vsub.f32 %v29, %v45
  %v54 = vsub.f32 %v30, %v46
  %v55 = vsub.f32 %v31, %v47
  %v56 = vld [vmem:[#allocation2] sm:$0x1]
  %v57 = vmul.f32 %v48, %v48
  %v58 = vmul.f32 %v49, %v49
  %v59 = vmul.f32 %v50, %v50
  %v60 = vmul.f32 %v51, %v51
  %v61 = vmul.f32 %v52, %v52
  %v62 = vmul.f32 %v53, %v53
  %v63 = vmul.f32 %v54, %v54
  %v64 = vmul.f32 %v55, %v55
  %v65 = vsub.f32 0.0, %v57
  %v66 = vsub.f32 0.0, %v58
  %v67 = vsub.f32 0.0, %v59
  %v68 = vsub.f32 0.0, %v60
  %v69 = vsub.f32 0.0, %v61
  %v70 = vsub.f32 0.0, %v62
  %v71 = vsub.f32 0.0, %v63
  %v72 = vsub.f32 0.0, %v64
  %v73 = vmul.f32 %v65, 1.442695
  %v74 = vpow.pop %v73
  %v75 = vmul.f32 %v66, 1.442695
  %v76 = vpow.pop %v75
  %v77 = vmul.f32 %v67, 1.442695
  %v78 = vpow.pop %v77
  %v79 = vmul.f32 %v68, 1.442695
  %v80 = vpow.pop %v79
  %v81 = vmul.f32 %v69, 1.442695
  %v82 = vpow.pop %v81
  %v83 = vmul.f32 %v70, 1.442695
  %v84 = vpow.pop %v83
  %v85 = vmul.f32 %v71, 1.442695
  %v86 = vpow.pop %v85
  %v87 = vmul.f32 %v72, 1.442695
  %v88 = vpow.pop %v87
  %v89 = vadd.f32 %v74, %v76
  %v90 = vadd.f32 %v89, %v78
  %v91 = vadd.f32 %v90, %v80
  %v92 = vadd.f32 %v91, %v82
  %v93 = vadd.f32 %v92, %v84
  %v94 = vadd.f32 %v93, %v86
  %v95 = vadd.f32 %v94, %v88
  %v96 = vrot.slane %v95, 4
  %v97 = vadd.f32 %v95, %v96
  %v98 = vrot.slane %v97, 2
  %v99 = vadd.f32 %v97, %v98
  %v100 = vrot.slane %v99, 1
  %v101 = vadd.f32 %v99, %v100
  %v102 = vadd.f32 %v56, %v101
  %103 = vst [vmem:[#allocation2] sm:$0x1] %v102
  // Predicated region
  $region14: #{_loss.16} parent=0 // pred_check
    %p104 = pneg %p11
  $region15: #{_loss.16} parent=0 // pred_check_branch
    %106 = sbr.rel (%p104) target = $region17
  $region16: #{_loss.16} parent=0 // pred_region
    %v107 = vld [vmem:[#allocation2] sm:$0x1]
    %108 = vst [vmem:[%s2] sm:$0x1] %v107
  $region17: #{_loss.16} parent=0 // pred_fallthru
    _
  // Predicated region
  $region18: #{_loss.16} parent=0 // pred_check
    _
  $region19: #{_loss.16} parent=0 // pred_check_branch
    %110 = sbr.rel (0) target = $region21
  $region20: #{_loss.16} parent=0 // pred_region
    _
  $region21: #{_loss.16} parent=0 // pred_fallthru
    _
  // Predicated region
  $region22: #{_loss.16} parent=0 // pred_check
    _
  $region23: #{_loss.16} parent=0 // pred_check_branch
    %112 = sbr.rel (0) target = $region25
  $region24: #{_loss.16} parent=0 // pred_region
    _
  $region25: #{_loss.16} parent=0 // pred_fallthru
    _

// kernel: _loss.10
$region0: #{_loss.10}
  #allocation0 [shape = 'u32[]', space=smem, size = 0x4, offset = 0x4, fixed_abs, tag = 'smem constant byte address 0x4 - core index']
  #allocation1 [shape = 'u32[144,128]{1,0:T(1,128)}', space=vmem, size = 0x12000, scoped, tag = 'internal scratch']
  %s0 = inlined_call_operand.vmem [shape: bf16[64,128], index: 0, kind: input, shape index: {}]
  %s1 = inlined_call_operand.vmem [shape: bf16[64,128], index: 1, kind: input, shape index: {}]
  %s2 = inlined_call_operand.vmem [shape: bf16[64,128], index: 2, kind: input, shape index: {}]
  %s3 = inlined_call_operand.vmem [shape: bf16[64,128], index: 3, kind: output, shape index: {}]
  %s4 = sld [smem:[#allocation0]]
  $region22: #{_loss.10} parent=0
    _
  %s6 = ssub.s32 1, %s4
  %s7 = scalar_select 0, %s6, %s4
  // Predicated region
  $region2: #{_loss.10} parent=0 // pred_check
    _
  $region3: #{_loss.10} parent=0 // pred_check_branch
    %9 = sbr.rel (0) target = $region5
  $region4: #{_loss.10} parent=0 // pred_region
    _
  $region5: #{_loss.10} parent=0 // pred_fallthru
    _
  // Predicated region
  $region6: #{_loss.10} parent=0 // pred_check
    _
  $region7: #{_loss.10} parent=0 // pred_check_branch
    %11 = sbr.rel (0) target = $region9
  $region8: #{_loss.10} parent=0 // pred_region
    _
  $region9: #{_loss.10} parent=0 // pred_fallthru
    _
  // Predicated region
  $region10: #{_loss.10} parent=0 // pred_check
    _
  $region11: #{_loss.10} parent=0 // pred_check_branch
    %13 = sbr.rel (0) target = $region13
  $region12: #{_loss.10} parent=0 // pred_region
    _
  $region13: #{_loss.10} parent=0 // pred_fallthru
    _
  %v14 = vld [vmem:[%s0] sm:$0xf]
  %v15 = vld [vmem:[%s0 + $0x4] sm:$0xf]
  %v16 = vld [vmem:[%s0 + $0x8] sm:$0xf]
  %v17 = vld [vmem:[%s0 + $0xc] sm:$0xf]
  %v18 = vld [vmem:[%s0 + $0x10] sm:$0xf]
  %v19 = vld [vmem:[%s0 + $0x14] sm:$0xf]
  %v20 = vld [vmem:[%s0 + $0x18] sm:$0xf]
  %v21 = vld [vmem:[%s0 + $0x1c] sm:$0xf]
  %v22 = vld [vmem:[%s1] sm:$0xf]
  %v23 = vld [vmem:[%s1 + $0x4] sm:$0xf]
  %v24 = vld [vmem:[%s1 + $0x8] sm:$0xf]
  %v25 = vld [vmem:[%s1 + $0xc] sm:$0xf]
  %v26 = vld [vmem:[%s1 + $0x10] sm:$0xf]
  %v27 = vld [vmem:[%s1 + $0x14] sm:$0xf]
  %v28 = vld [vmem:[%s1 + $0x18] sm:$0xf]
  %v29 = vld [vmem:[%s1 + $0x1c] sm:$0xf]
  %v30 = vmax.bf16 %v14, %v22
  %v31 = vmax.bf16 %v15, %v23
  %v32 = vmax.bf16 %v16, %v24
  %v33 = vmax.bf16 %v17, %v25
  %v34 = vmax.bf16 %v18, %v26
  %v35 = vmax.bf16 %v19, %v27
  %v36 = vmax.bf16 %v20, %v28
  %v37 = vmax.bf16 %v21, %v29
  %v38 = vld [vmem:[%s2] sm:$0xf]
  %v39 = vld [vmem:[%s2 + $0x4] sm:$0xf]
  %v40 = vld [vmem:[%s2 + $0x8] sm:$0xf]
  %v41 = vld [vmem:[%s2 + $0xc] sm:$0xf]
  %v42 = vld [vmem:[%s2 + $0x10] sm:$0xf]
  %v43 = vld [vmem:[%s2 + $0x14] sm:$0xf]
  %v44 = vld [vmem:[%s2 + $0x18] sm:$0xf]
  %v45 = vld [vmem:[%s2 + $0x1c] sm:$0xf]
  %v46 = vmax.bf16 %v30, %v38
  %v47 = vmax.bf16 %v31, %v39
  %v48 = vmax.bf16 %v32, %v40
  %v49 = vmax.bf16 %v33, %v41
  %v50 = vmax.bf16 %v34, %v42
  %v51 = vmax.bf16 %v35, %v43
  %v52 = vmax.bf16 %v36, %v44
  %v53 = vmax.bf16 %v37, %v45
  %54 = vst [vmem:[%s3] sm:$0xf] %v46
  %55 = vst [vmem:[%s3 + $0x4] sm:$0xf] %v47
  %56 = vst [vmem:[%s3 + $0x8] sm:$0xf] %v48
  %57 = vst [vmem:[%s3 + $0xc] sm:$0xf] %v49
  %58 = vst [vmem:[%s3 + $0x10] sm:$0xf] %v50
  %59 = vst [vmem:[%s3 + $0x14] sm:$0xf] %v51
  %60 = vst [vmem:[%s3 + $0x18] sm:$0xf] %v52
  %61 = vst [vmem:[%s3 + $0x1c] sm:$0xf] %v53
  // Predicated region
  $region14: #{_loss.10} parent=0 // pred_check
    _
  $region15: #{_loss.10} parent=0 // pred_check_branch
    %63 = sbr.rel (0) target = $region17
  $region16: #{_loss.10} parent=0 // pred_region
    _
  $region17: #{_loss.10} parent=0 // pred_fallthru
    _
  // Predicated region
  $region18: #{_loss.10} parent=0 // pred_check
    _
  $region19: #{_loss.10} parent=0 // pred_check_branch
    %65 = sbr.rel (0) target = $region21
  $region20: #{_loss.10} parent=0 // pred_region
    _
  $region21: #{_loss.10} parent=0 // pred_fallthru
    _

// kernel: _loss.9
$region0: #{_loss.9}
  #allocation0 [shape = 'u32[]', space=smem, size = 0x4, offset = 0x4, fixed_abs, tag = 'smem constant byte address 0x4 - core index']
  #allocation1 [shape = 'u32[144,128]{1,0:T(1,128)}', space=vmem, size = 0x12000, scoped, tag = 'internal scratch']
  %s0 = inlined_call_operand.vmem [shape: bf16[256,147], index: 0, kind: input, shape index: {}]
  %s1 = inlined_call_operand.vmem [shape: bf16[147,64], index: 1, kind: input, shape index: {}]
  %s2 = inlined_call_operand.vmem [shape: f32[1,64], index: 2, kind: input, shape index: {}]
  %s3 = inlined_call_operand.vmem [shape: bf16[256,64], index: 3, kind: output, shape index: {}]
  %s4 = sld [smem:[#allocation0]]
  $region22: #{_loss.9} parent=0
    _
  %s6 = ssub.s32 1, %s4
  %s7 = scalar_select 0, %s6, %s4
  // Predicated region
  $region2: #{_loss.9} parent=0 // pred_check
    _
  $region3: #{_loss.9} parent=0 // pred_check_branch
    %9 = sbr.rel (0) target = $region5
  $region4: #{_loss.9} parent=0 // pred_region
    _
  $region5: #{_loss.9} parent=0 // pred_fallthru
    _
  // Predicated region
  $region6: #{_loss.9} parent=0 // pred_check
    _
  $region7: #{_loss.9} parent=0 // pred_check_branch
    %11 = sbr.rel (0) target = $region9
  $region8: #{_loss.9} parent=0 // pred_region
    _
  $region9: #{_loss.9} parent=0 // pred_fallthru
    _
  // Predicated region
  $region10: #{_loss.9} parent=0 // pred_check
    _
  $region11: #{_loss.9} parent=0 // pred_check_branch
    %13 = sbr.rel (0) target = $region13
  $region12: #{_loss.9} parent=0 // pred_region
    _
  $region13: #{_loss.9} parent=0 // pred_fallthru
    _
  %v15 = vld [vmem:[%s0] sm:$0xff]
  %v16 = vld [vmem:[%s0 + $0x8] sm:$0xff]
  %v17 = vld [vmem:[%s0 + $0x10] sm:$0xff]
  %v18 = vld [vmem:[%s0 + $0x18] sm:$0xff]
  %v19 = vld [vmem:[%s0 + $0x20] sm:$0xff]
  %v20 = vld [vmem:[%s0 + $0x28] sm:$0xff]
  %v21 = vld [vmem:[%s0 + $0x30] sm:$0xff]
  %v22 = vld [vmem:[%s0 + $0x38] sm:$0xff]
  %v23 = vld [vmem:[%s0 + $0x40] sm:$0xff]
  %v24 = vld [vmem:[%s0 + $0x48] sm:$0xff]
  %v25 = vld [vmem:[%s0 + $0x50] sm:$0xff]
  %v26 = vld [vmem:[%s0 + $0x58] sm:$0xff]
  %v27 = vld [vmem:[%s0 + $0x60] sm:$0xff]
  %v28 = vld [vmem:[%s0 + $0x68] sm:$0xff]
  %v29 = vld [vmem:[%s0 + $0x70] sm:$0xff]
  %v30 = vld [vmem:[%s0 + $0x78] sm:$0xff]
  %v31 = vld [vmem:[%s0 + $0x80] sm:$0xff]
  %v32 = vld [vmem:[%s0 + $0x88] sm:$0xff]
  %v33 = vld [vmem:[%s0 + $0x90] sm:$0xff]
  %v34 = vld [vmem:[%s0 + $0x98] sm:$0xff]
  %v35 = vld [vmem:[%s0 + $0xa0] sm:$0xff]
  %v36 = vld [vmem:[%s0 + $0xa8] sm:$0xff]
  %v37 = vld [vmem:[%s0 + $0xb0] sm:$0xff]
  %v38 = vld [vmem:[%s0 + $0xb8] sm:$0xff]
  %v39 = vld [vmem:[%s0 + $0xc0] sm:$0xff]
  %v40 = vld [vmem:[%s0 + $0xc8] sm:$0xff]
  %v41 = vld [vmem:[%s0 + $0xd0] sm:$0xff]
  %v42 = vld [vmem:[%s0 + $0xd8] sm:$0xff]
  %v43 = vld [vmem:[%s0 + $0xe0] sm:$0xff]
  %v44 = vld [vmem:[%s0 + $0xe8] sm:$0xff]
  %v45 = vld [vmem:[%s0 + $0xf0] sm:$0xff]
  %v46 = vld [vmem:[%s0 + $0xf8] sm:$0xff]
  %v47 = vld [vmem:[%s1] sm:$0xf]
  %v48 = vld [vmem:[%s1 + $0x4] sm:$0xf]
  %v49 = vld [vmem:[%s1 + $0x8] sm:$0xf]
  %v50 = vld [vmem:[%s1 + $0xc] sm:$0xf]
  %v51 = vld [vmem:[%s1 + $0x10] sm:$0xf]
  %v52 = vld [vmem:[%s1 + $0x14] sm:$0xf]
  %v53 = vld [vmem:[%s1 + $0x18] sm:$0xf]
  %v54 = vld [vmem:[%s1 + $0x1c] sm:$0xf]
  %v55 = vld [vmem:[%s1 + $0x20] sm:$0xf]
  %v56 = vld [vmem:[%s1 + $0x24] sm:$0xf]
  %v57 = vld [vmem:[%s1 + $0x28] sm:$0xf]
  %v58 = vld [vmem:[%s1 + $0x2c] sm:$0xf]
  %v59 = vld [vmem:[%s1 + $0x30] sm:$0xf]
  %v60 = vld [vmem:[%s1 + $0x34] sm:$0xf]
  %v61 = vld [vmem:[%s1 + $0x38] sm:$0xf]
  %v62 = vld [vmem:[%s1 + $0x3c] sm:$0xf]
  %v63 = vld [vmem:[%s1 + $0x40] sm:$0xf]
  %v64 = vld [vmem:[%s1 + $0x44] sm:$0xf]
  %v65 = vld [vmem:[%s1 + $0x48] sm:$0x3]
  %v66 = vld [vmem:[%s2] sm:$0x1]
  %v68 = vlaneseq
  %v69 = vshrl.u32 %v68, 7
  %v70 = vsub.s32 0, %v69
  %v71 = vrot.slane %v66, %v70
  %v105 = vunpack.c.l.b16 %v15
  %v106 = vunpack.c.h.b16 %v15
  %v107 = vunpack.c.l.b16 %v16
  %v108 = vunpack.c.h.b16 %v16
  %v109 = vunpack.c.l.b16 %v17
  %v110 = vunpack.c.h.b16 %v17
  %v111 = vunpack.c.l.b16 %v18
  %v112 = vunpack.c.h.b16 %v18
  %v113 = vunpack.c.l.b16 %v19
  %v114 = vunpack.c.h.b16 %v19
  %v115 = vunpack.c.l.b16 %v20
  %v116 = vunpack.c.h.b16 %v20
  %v117 = vunpack.c.l.b16 %v21
  %v118 = vunpack.c.h.b16 %v21
  %v119 = vunpack.c.l.b16 %v22
  %v120 = vunpack.c.h.b16 %v22
  %v121 = vunpack.c.l.b16 %v23
  %v122 = vunpack.c.h.b16 %v23
  %v123 = vunpack.c.l.b16 %v24
  %v124 = vunpack.c.h.b16 %v24
  %v125 = vunpack.c.l.b16 %v25
  %v126 = vunpack.c.h.b16 %v25
  %v127 = vunpack.c.l.b16 %v26
  %v128 = vunpack.c.h.b16 %v26
  %v129 = vunpack.c.l.b16 %v27
  %v130 = vunpack.c.h.b16 %v27
  %v131 = vunpack.c.l.b16 %v28
  %v132 = vunpack.c.h.b16 %v28
  %v133 = vunpack.c.l.b16 %v29
  %v134 = vunpack.c.h.b16 %v29
  %v135 = vunpack.c.l.b16 %v30
  %v136 = vunpack.c.h.b16 %v30
  %v137 = vunpack.c.l.b16 %v31
  %v138 = vunpack.c.h.b16 %v31
  %v139 = vunpack.c.l.b16 %v32
  %v140 = vunpack.c.h.b16 %v32
  %v141 = vunpack.c.l.b16 %v33
  %v142 = vunpack.c.h.b16 %v33
  %v143 = vunpack.c.l.b16 %v34
  %v144 = vunpack.c.h.b16 %v34
  %v145 = vunpack.c.l.b16 %v35
  %v146 = vunpack.c.h.b16 %v35
  %v147 = vunpack.c.l.b16 %v36
  %v148 = vunpack.c.h.b16 %v36
  %v149 = vunpack.c.l.b16 %v37
  %v150 = vunpack.c.h.b16 %v37
  %v151 = vunpack.c.l.b16 %v38
  %v152 = vunpack.c.h.b16 %v38
  %v153 = vunpack.c.l.b16 %v39
  %v154 = vunpack.c.h.b16 %v39
  %v155 = vunpack.c.l.b16 %v40
  %v156 = vunpack.c.h.b16 %v40
  %v157 = vunpack.c.l.b16 %v41
  %v158 = vunpack.c.h.b16 %v41
  %v159 = vunpack.c.l.b16 %v42
  %v160 = vunpack.c.h.b16 %v42
  %v161 = vunpack.c.l.b16 %v43
  %v162 = vunpack.c.h.b16 %v43
  %v163 = vunpack.c.l.b16 %v44
  %v164 = vunpack.c.h.b16 %v44
  %v165 = vunpack.c.l.b16 %v45
  %v166 = vunpack.c.h.b16 %v45
  %v167 = vunpack.c.l.b16 %v46
  %v168 = vunpack.c.h.b16 %v46
  %v169 = vpack.c.b16 %v107, %v105
  %v170 = vpack.c.b16 %v108, %v106
  %v171 = vpack.c.b16 %v111, %v109
  %v172 = vpack.c.b16 %v112, %v110
  %v173 = vpack.c.b16 %v115, %v113
  %v174 = vpack.c.b16 %v116, %v114
  %v175 = vpack.c.b16 %v119, %v117
  %v176 = vpack.c.b16 %v120, %v118
  %v177 = vpack.c.b16 %v123, %v121
  %v178 = vpack.c.b16 %v124, %v122
  %v179 = vpack.c.b16 %v127, %v125
  %v180 = vpack.c.b16 %v128, %v126
  %v181 = vpack.c.b16 %v131, %v129
  %v182 = vpack.c.b16 %v132, %v130
  %v183 = vpack.c.b16 %v135, %v133
  %v184 = vpack.c.b16 %v136, %v134
  %v185 = vpack.c.b16 %v139, %v137
  %v186 = vpack.c.b16 %v140, %v138
  %v187 = vpack.c.b16 %v143, %v141
  %v188 = vpack.c.b16 %v144, %v142
  %v189 = vpack.c.b16 %v147, %v145
  %v190 = vpack.c.b16 %v148, %v146
  %v191 = vpack.c.b16 %v151, %v149
  %v192 = vpack.c.b16 %v152, %v150
  %v193 = vpack.c.b16 %v155, %v153
  %v194 = vpack.c.b16 %v156, %v154
  %v195 = vpack.c.b16 %v159, %v157
  %v196 = vpack.c.b16 %v160, %v158
  %v197 = vpack.c.b16 %v163, %v161
  %v198 = vpack.c.b16 %v164, %v162
  %v199 = vpack.c.b16 %v167, %v165
  %v200 = vpack.c.b16 %v168, %v166
  %v236 = vunpack.c.l.b16 %v47
  %v237 = vunpack.c.l.b16 %v48
  %v238 = vunpack.c.l.b16 %v49
  %v239 = vunpack.c.l.b16 %v50
  %v240 = vunpack.c.l.b16 %v51
  %v241 = vunpack.c.l.b16 %v52
  %v242 = vunpack.c.l.b16 %v53
  %v243 = vunpack.c.l.b16 %v54
  %v244 = vunpack.c.l.b16 %v55
  %v245 = vunpack.c.l.b16 %v56
  %v246 = vunpack.c.l.b16 %v57
  %v247 = vunpack.c.l.b16 %v58
  %v248 = vunpack.c.l.b16 %v59
  %v249 = vunpack.c.l.b16 %v60
  %v250 = vunpack.c.l.b16 %v61
  %v251 = vunpack.c.l.b16 %v62
  %v252 = vunpack.c.l.b16 %v63
  %v253 = vunpack.c.l.b16 %v64
  %v254 = vunpack.c.l.b16 %v65
  %v255 = vpack.c.b16 %v237, %v236
  %v256 = vpack.c.b16 %v239, %v238
  %v257 = vpack.c.b16 %v241, %v240
  %v258 = vpack.c.b16 %v243, %v242
  %v259 = vpack.c.b16 %v245, %v244
  %v260 = vpack.c.b16 %v247, %v246
  %v261 = vpack.c.b16 %v249, %v248
  %v262 = vpack.c.b16 %v251, %v250
  %v263 = vpack.c.b16 %v253, %v252
  %v264 = vpack.c.b16 %v254, %v254
  %vm274 = vcmask 154624
  %v276 = vsel %vm274, %v170, 0
  %v279 = vsel %vm274, %v172, 0
  %v282 = vsel %vm274, %v174, 0
  %v285 = vsel %vm274, %v176, 0
  %v288 = vsel %vm274, %v178, 0
  %v291 = vsel %vm274, %v180, 0
  %v294 = vsel %vm274, %v182, 0
  %v297 = vsel %vm274, %v184, 0
  %v300 = vsel %vm274, %v186, 0
  %v303 = vsel %vm274, %v188, 0
  %v306 = vsel %vm274, %v190, 0
  %v309 = vsel %vm274, %v192, 0
  %v312 = vsel %vm274, %v194, 0
  %v315 = vsel %vm274, %v196, 0
  %v318 = vsel %vm274, %v198, 0
  %v321 = vsel %vm274, %v200, 0
  %vm323 = vcmask 1040384
  %vm324 = vcmask 1041408
  %v325 = vsel %vm323, 4294967295, 65535
  %v326 = vsel %vm324, %v325, 0
  %v328 = vand.u32 %v264, %v326
  %330 = vmatprep.subr.bf16.mxu0 0
  %331 = vmatpush1.bf16.msra.mxu0 %v255
  %332 = vmatprep.subr.bf16.mxu0 0
  %333 = vmatpush1.bf16.msra.mxu0 %v256
  %334 = vmatprep.subr.bf16.mxu0 0
  %335 = vmatpush1.bf16.msra.mxu0 %v257
  %336 = vmatprep.subr.bf16.mxu0 0
  %337 = vmatpush1.bf16.msra.mxu0 %v258
  %338 = vmatprep.subr.bf16.mxu0 0
  %339 = vmatpush1.bf16.msra.mxu0 %v259
  %340 = vmatprep.subr.bf16.mxu0 0
  %341 = vmatpush1.bf16.msra.mxu0 %v260
  %342 = vmatprep.subr.bf16.mxu0 0
  %343 = vmatpush1.bf16.msra.mxu0 %v261
  %344 = vmatprep.subr.bf16.mxu0 0
  %345 = vmatpush1.bf16.msra.mxu0 %v262
  %346 = vmatprep.subr.bf16.mxu0 0
  %347 = vmatpush1.bf16.msra.mxu0 %v263
  %348 = vmatprep.subr.bf16.mxu0 0
  %349 = vmatpush1.bf16.msra.mxu0 %v328
  %350 = vmatprep.subr.bf16.mxu0 0
  %351 = vmatpush1.bf16.msra.mxu0 0
  %352 = vmatprep.subr.bf16.mxu0 0
  %353 = vmatpush1.bf16.msra.mxu0 0
  %354 = vmatprep.subr.bf16.mxu0 0
  %355 = vmatpush1.bf16.msra.mxu0 0
  %356 = vmatprep.subr.bf16.mxu0 0
  %357 = vmatpush1.bf16.msra.mxu0 0
  %358 = vmatprep.subr.bf16.mxu0 0
  %359 = vmatpush1.bf16.msra.mxu0 0
  %360 = vmatprep.subr.bf16.mxu0 0
  %361 = vmatpush1.bf16.msra.mxu0 0
  %362 = vmatprep.mubr.bf16.mxu0 %v276
  %363 = vmatmul.mubr.bf16.gmra.mrb[0].mxu0 %v169
  %v364 = vpop.f32.mrb[0].mxu0
  %v365 = vadd.f32 %v71, %v364
  %v366 = vpop.f32.mrb[0].mxu0
  %v367 = vpop.f32.mrb[0].mxu0
  %v368 = vadd.f32 %v71, %v367
  %v369 = vpop.f32.mrb[0].mxu0
  %370 = vmatprep.mubr.bf16.mxu0 %v279
  %371 = vmatmul.mubr.bf16.gmra.mrb[0].mxu0 %v171
  %v372 = vpop.f32.mrb[0].mxu0
  %v373 = vadd.f32 %v71, %v372
  %v374 = vpop.f32.mrb[0].mxu0
  %v375 = vpop.f32.mrb[0].mxu0
  %v376 = vadd.f32 %v71, %v375
  %v377 = vpop.f32.mrb[0].mxu0
  %378 = vmatprep.mubr.bf16.mxu0 %v282
  %379 = vmatmul.mubr.bf16.gmra.mrb[0].mxu0 %v173
  %v380 = vpop.f32.mrb[0].mxu0
  %v381 = vadd.f32 %v71, %v380
  %v382 = vpop.f32.mrb[0].mxu0
  %v383 = vpop.f32.mrb[0].mxu0
  %v384 = vadd.f32 %v71, %v383
  %v385 = vpop.f32.mrb[0].mxu0
  %386 = vmatprep.mubr.bf16.mxu0 %v285
  %387 = vmatmul.mubr.bf16.gmra.mrb[0].mxu0 %v175
  %v388 = vpop.f32.mrb[0].mxu0
  %v389 = vadd.f32 %v71, %v388
  %v390 = vpop.f32.mrb[0].mxu0
  %v391 = vpop.f32.mrb[0].mxu0
  %v392 = vadd.f32 %v71, %v391
  %v393 = vpop.f32.mrb[0].mxu0
  %394 = vmatprep.mubr.bf16.mxu0 %v288
  %395 = vmatmul.mubr.bf16.gmra.mrb[0].mxu0 %v177
  %v396 = vpop.f32.mrb[0].mxu0
  %v397 = vadd.f32 %v71, %v396
  %v398 = vpop.f32.mrb[0].mxu0
  %v399 = vpop.f32.mrb[0].mxu0
  %v400 = vadd.f32 %v71, %v399
  %v401 = vpop.f32.mrb[0].mxu0
  %402 = vmatprep.mubr.bf16.mxu0 %v291
  %403 = vmatmul.mubr.bf16.gmra.mrb[0].mxu0 %v179
  %v404 = vpop.f32.mrb[0].mxu0
  %v405 = vadd.f32 %v71, %v404
  %v406 = vpop.f32.mrb[0].mxu0
  %v407 = vpop.f32.mrb[0].mxu0
  %v408 = vadd.f32 %v71, %v407
  %v409 = vpop.f32.mrb[0].mxu0
  %410 = vmatprep.mubr.bf16.mxu0 %v294
  %411 = vmatmul.mubr.bf16.gmra.mrb[0].mxu0 %v181
  %v412 = vpop.f32.mrb[0].mxu0
  %v413 = vadd.f32 %v71, %v412
  %v414 = vpop.f32.mrb[0].mxu0
  %v415 = vpop.f32.mrb[0].mxu0
  %v416 = vadd.f32 %v71, %v415
  %v417 = vpop.f32.mrb[0].mxu0
  %418 = vmatprep.mubr.bf16.mxu0 %v297
  %419 = vmatmul.mubr.bf16.gmra.mrb[0].mxu0 %v183
  %v420 = vpop.f32.mrb[0].mxu0
  %v421 = vadd.f32 %v71, %v420
  %v422 = vpop.f32.mrb[0].mxu0
  %v423 = vpop.f32.mrb[0].mxu0
  %v424 = vadd.f32 %v71, %v423
  %v425 = vpop.f32.mrb[0].mxu0
  %426 = vmatprep.mubr.bf16.mxu0 %v300
  %427 = vmatmul.mubr.bf16.gmra.mrb[0].mxu0 %v185
  %v428 = vpop.f32.mrb[0].mxu0
  %v429 = vadd.f32 %v71, %v428
  %v430 = vpop.f32.mrb[0].mxu0
  %v431 = vpop.f32.mrb[0].mxu0
  %v432 = vadd.f32 %v71, %v431
  %v433 = vpop.f32.mrb[0].mxu0
  %434 = vmatprep.mubr.bf16.mxu0 %v303
  %435 = vmatmul.mubr.bf16.gmra.mrb[0].mxu0 %v187
  %v436 = vpop.f32.mrb[0].mxu0
  %v437 = vadd.f32 %v71, %v436
  %v438 = vpop.f32.mrb[0].mxu0
  %v439 = vpop.f32.mrb[0].mxu0
  %v440 = vadd.f32 %v71, %v439
  %v441 = vpop.f32.mrb[0].mxu0
  %442 = vmatprep.mubr.bf16.mxu0 %v306
  %443 = vmatmul.mubr.bf16.gmra.mrb[0].mxu0 %v189
  %v444 = vpop.f32.mrb[0].mxu0
  %v445 = vadd.f32 %v71, %v444
  %v446 = vpop.f32.mrb[0].mxu0
  %v447 = vpop.f32.mrb[0].mxu0
  %v448 = vadd.f32 %v71, %v447
  %v449 = vpop.f32.mrb[0].mxu0
  %450 = vmatprep.mubr.bf16.mxu0 %v309
  %451 = vmatmul.mubr.bf16.gmra.mrb[0].mxu0 %v191
  %v452 = vpop.f32.mrb[0].mxu0
  %v453 = vadd.f32 %v71, %v452
  %v454 = vpop.f32.mrb[0].mxu0
  %v455 = vpop.f32.mrb[0].mxu0
  %v456 = vadd.f32 %v71, %v455
  %v457 = vpop.f32.mrb[0].mxu0
  %458 = vmatprep.mubr.bf16.mxu0 %v312
  %459 = vmatmul.mubr.bf16.gmra.mrb[0].mxu0 %v193
  %v460 = vpop.f32.mrb[0].mxu0
  %v461 = vadd.f32 %v71, %v460
  %v462 = vpop.f32.mrb[0].mxu0
  %v463 = vpop.f32.mrb[0].mxu0
  %v464 = vadd.f32 %v71, %v463
  %v465 = vpop.f32.mrb[0].mxu0
  %466 = vmatprep.mubr.bf16.mxu0 %v315
  %467 = vmatmul.mubr.bf16.gmra.mrb[0].mxu0 %v195
  %v468 = vpop.f32.mrb[0].mxu0
  %v469 = vadd.f32 %v71, %v468
  %v470 = vpop.f32.mrb[0].mxu0
  %v471 = vpop.f32.mrb[0].mxu0
  %v472 = vadd.f32 %v71, %v471
  %v473 = vpop.f32.mrb[0].mxu0
  %474 = vmatprep.mubr.bf16.mxu0 %v318
  %475 = vmatmul.mubr.bf16.gmra.mrb[0].mxu0 %v197
  %v476 = vpop.f32.mrb[0].mxu0
  %v477 = vadd.f32 %v71, %v476
  %v478 = vpop.f32.mrb[0].mxu0
  %v479 = vpop.f32.mrb[0].mxu0
  %v480 = vadd.f32 %v71, %v479
  %v481 = vpop.f32.mrb[0].mxu0
  %482 = vmatprep.mubr.bf16.mxu0 %v321
  %483 = vmatmul.mubr.bf16.gmra.mrb[0].mxu0 %v199
  %v484 = vpop.f32.mrb[0].mxu0
  %v485 = vadd.f32 %v71, %v484
  %v486 = vpop.f32.mrb[0].mxu0
  %v487 = vpop.f32.mrb[0].mxu0
  %v488 = vadd.f32 %v71, %v487
  %v489 = vpop.f32.mrb[0].mxu0
  %490 = vdwg.mxu0
  %v491 = vmax.f32 %v365, 0.0
  %v492 = vmax.f32 %v368, 0.0
  %v493 = vmax.f32 %v373, 0.0
  %v494 = vmax.f32 %v376, 0.0
  %v495 = vmax.f32 %v381, 0.0
  %v496 = vmax.f32 %v384, 0.0
  %v497 = vmax.f32 %v389, 0.0
  %v498 = vmax.f32 %v392, 0.0
  %v499 = vmax.f32 %v397, 0.0
  %v500 = vmax.f32 %v400, 0.0
  %v501 = vmax.f32 %v405, 0.0
  %v502 = vmax.f32 %v408, 0.0
  %v503 = vmax.f32 %v413, 0.0
  %v504 = vmax.f32 %v416, 0.0
  %v505 = vmax.f32 %v421, 0.0
  %v506 = vmax.f32 %v424, 0.0
  %v507 = vmax.f32 %v429, 0.0
  %v508 = vmax.f32 %v432, 0.0
  %v509 = vmax.f32 %v437, 0.0
  %v510 = vmax.f32 %v440, 0.0
  %v511 = vmax.f32 %v445, 0.0
  %v512 = vmax.f32 %v448, 0.0
  %v513 = vmax.f32 %v453, 0.0
  %v514 = vmax.f32 %v456, 0.0
  %v515 = vmax.f32 %v461, 0.0
  %v516 = vmax.f32 %v464, 0.0
  %v517 = vmax.f32 %v469, 0.0
  %v518 = vmax.f32 %v472, 0.0
  %v519 = vmax.f32 %v477, 0.0
  %v520 = vmax.f32 %v480, 0.0
  %v521 = vmax.f32 %v485, 0.0
  %v522 = vmax.f32 %v488, 0.0
  %v523 = vpack.c.bf16 %v492, %v491
  %v524 = vpack.c.bf16 %v494, %v493
  %v525 = vpack.c.bf16 %v496, %v495
  %v526 = vpack.c.bf16 %v498, %v497
  %v527 = vpack.c.bf16 %v500, %v499
  %v528 = vpack.c.bf16 %v502, %v501
  %v529 = vpack.c.bf16 %v504, %v503
  %v530 = vpack.c.bf16 %v506, %v505
  %v531 = vpack.c.bf16 %v508, %v507
  %v532 = vpack.c.bf16 %v510, %v509
  %v533 = vpack.c.bf16 %v512, %v511
  %v534 = vpack.c.bf16 %v514, %v513
  %v535 = vpack.c.bf16 %v516, %v515
  %v536 = vpack.c.bf16 %v518, %v517
  %v537 = vpack.c.bf16 %v520, %v519
  %v538 = vpack.c.bf16 %v522, %v521
  %v555 = vunpack.c.l.b16 %v523
  %v556 = vunpack.c.h.b16 %v523
  %v557 = vunpack.c.l.b16 %v524
  %v558 = vunpack.c.h.b16 %v524
  %v559 = vunpack.c.l.b16 %v525
  %v560 = vunpack.c.h.b16 %v525
  %v561 = vunpack.c.l.b16 %v526
  %v562 = vunpack.c.h.b16 %v526
  %v563 = vunpack.c.l.b16 %v527
  %v564 = vunpack.c.h.b16 %v527
  %v565 = vunpack.c.l.b16 %v528
  %v566 = vunpack.c.h.b16 %v528
  %v567 = vunpack.c.l.b16 %v529
  %v568 = vunpack.c.h.b16 %v529
  %v569 = vunpack.c.l.b16 %v530
  %v570 = vunpack.c.h.b16 %v530
  %v571 = vunpack.c.l.b16 %v531
  %v572 = vunpack.c.h.b16 %v531
  %v573 = vunpack.c.l.b16 %v532
  %v574 = vunpack.c.h.b16 %v532
  %v575 = vunpack.c.l.b16 %v533
  %v576 = vunpack.c.h.b16 %v533
  %v577 = vunpack.c.l.b16 %v534
  %v578 = vunpack.c.h.b16 %v534
  %v579 = vunpack.c.l.b16 %v535
  %v580 = vunpack.c.h.b16 %v535
  %v581 = vunpack.c.l.b16 %v536
  %v582 = vunpack.c.h.b16 %v536
  %v583 = vunpack.c.l.b16 %v537
  %v584 = vunpack.c.h.b16 %v537
  %v585 = vunpack.c.l.b16 %v538
  %v586 = vunpack.c.h.b16 %v538
  %v587 = vpack.c.b16 %v555, %v555
  %v588 = vpack.c.b16 %v556, %v556
  %v589 = vpack.c.b16 %v557, %v557
  %v590 = vpack.c.b16 %v558, %v558
  %v591 = vpack.c.b16 %v559, %v559
  %v592 = vpack.c.b16 %v560, %v560
  %v593 = vpack.c.b16 %v561, %v561
  %v594 = vpack.c.b16 %v562, %v562
  %v595 = vpack.c.b16 %v563, %v563
  %v596 = vpack.c.b16 %v564, %v564
  %v597 = vpack.c.b16 %v565, %v565
  %v598 = vpack.c.b16 %v566, %v566
  %v599 = vpack.c.b16 %v567, %v567
  %v600 = vpack.c.b16 %v568, %v568
  %v601 = vpack.c.b16 %v569, %v569
  %v602 = vpack.c.b16 %v570, %v570
  %v603 = vpack.c.b16 %v571, %v571
  %v604 = vpack.c.b16 %v572, %v572
  %v605 = vpack.c.b16 %v573, %v573
  %v606 = vpack.c.b16 %v574, %v574
  %v607 = vpack.c.b16 %v575, %v575
  %v608 = vpack.c.b16 %v576, %v576
  %v609 = vpack.c.b16 %v577, %v577
  %v610 = vpack.c.b16 %v578, %v578
  %v611 = vpack.c.b16 %v579, %v579
  %v612 = vpack.c.b16 %v580, %v580
  %v613 = vpack.c.b16 %v581, %v581
  %v614 = vpack.c.b16 %v582, %v582
  %v615 = vpack.c.b16 %v583, %v583
  %v616 = vpack.c.b16 %v584, %v584
  %v617 = vpack.c.b16 %v585, %v585
  %v618 = vpack.c.b16 %v586, %v586
  %vm651 = vcmask 519168
  %652 = vst.msk [vmem:[%s3] sm:$0xf] %vm651, %v587
  %653 = vst.msk [vmem:[%s3 + $0x4] sm:$0xf] %vm651, %v588
  %654 = vst.msk [vmem:[%s3 + $0x8] sm:$0xf] %vm651, %v589
  %655 = vst.msk [vmem:[%s3 + $0xc] sm:$0xf] %vm651, %v590
  %656 = vst.msk [vmem:[%s3 + $0x10] sm:$0xf] %vm651, %v591
  %657 = vst.msk [vmem:[%s3 + $0x14] sm:$0xf] %vm651, %v592
  %658 = vst.msk [vmem:[%s3 + $0x18] sm:$0xf] %vm651, %v593
  %659 = vst.msk [vmem:[%s3 + $0x1c] sm:$0xf] %vm651, %v594
  %660 = vst.msk [vmem:[%s3 + $0x20] sm:$0xf] %vm651, %v595
  %661 = vst.msk [vmem:[%s3 + $0x24] sm:$0xf] %vm651, %v596
  %662 = vst.msk [vmem:[%s3 + $0x28] sm:$0xf] %vm651, %v597
  %663 = vst.msk [vmem:[%s3 + $0x2c] sm:$0xf] %vm651, %v598
  %664 = vst.msk [vmem:[%s3 + $0x30] sm:$0xf] %vm651, %v599
  %665 = vst.msk [vmem:[%s3 + $0x34] sm:$0xf] %vm651, %v600
  %666 = vst.msk [vmem:[%s3 + $0x38] sm:$0xf] %vm651, %v601
  %667 = vst.msk [vmem:[%s3 + $0x3c] sm:$0xf] %vm651, %v602
  %668 = vst.msk [vmem:[%s3 + $0x40] sm:$0xf] %vm651, %v603
  %669 = vst.msk [vmem:[%s3 + $0x44] sm:$0xf] %vm651, %v604
  %670 = vst.msk [vmem:[%s3 + $0x48] sm:$0xf] %vm651, %v605
  %671 = vst.msk [vmem:[%s3 + $0x4c] sm:$0xf] %vm651, %v606
  %672 = vst.msk [vmem:[%s3 + $0x50] sm:$0xf] %vm651, %v607
  %673 = vst.msk [vmem:[%s3 + $0x54] sm:$0xf] %vm651, %v608
  %674 = vst.msk [vmem:[%s3 + $0x58] sm:$0xf] %vm651, %v609
  %675 = vst.msk [vmem:[%s3 + $0x5c] sm:$0xf] %vm651, %v610
  %676 = vst.msk [vmem:[%s3 + $0x60] sm:$0xf] %vm651, %v611
  %677 = vst.msk [vmem:[%s3 + $0x64] sm:$0xf] %vm651, %v612
  %678 = vst.msk [vmem:[%s3 + $0x68] sm:$0xf] %vm651, %v613
  %679 = vst.msk [vmem:[%s3 + $0x6c] sm:$0xf] %vm651, %v614
  %680 = vst.msk [vmem:[%s3 + $0x70] sm:$0xf] %vm651, %v615
  %681 = vst.msk [vmem:[%s3 + $0x74] sm:$0xf] %vm651, %v616
  %682 = vst.msk [vmem:[%s3 + $0x78] sm:$0xf] %vm651, %v617
  %683 = vst.msk [vmem:[%s3 + $0x7c] sm:$0xf] %vm651, %v618
  // Predicated region
  $region14: #{_loss.9} parent=0 // pred_check
    _
  $region15: #{_loss.9} parent=0 // pred_check_branch
    %685 = sbr.rel (0) target = $region17
  $region16: #{_loss.9} parent=0 // pred_region
    _
  $region17: #{_loss.9} parent=0 // pred_fallthru
    _
  // Predicated region
  $region18: #{_loss.9} parent=0 // pred_check
    _
  $region19: #{_loss.9} parent=0 // pred_check_branch
    %687 = sbr.rel (0) target = $region21
  $region20: #{_loss.9} parent=0 // pred_region
    _
  $region21: #{_loss.9} parent=0 // pred_fallthru
    _

// kernel: _loss.11
$region0: #{_loss.11}
  #allocation0 [shape = 'u32[]', space=smem, size = 0x4, offset = 0x4, fixed_abs, tag = 'smem constant byte address 0x4 - core index']
  #allocation1 [shape = 'u32[144,128]{1,0:T(1,128)}', space=vmem, size = 0x12000, scoped, tag = 'internal scratch']
  %s0 = inlined_call_operand.vmem [shape: bf16[32,128], index: 0, kind: input, shape index: {}]
  %s1 = inlined_call_operand.vmem [shape: bf16[32,128], index: 1, kind: input, shape index: {}]
  %s2 = inlined_call_operand.vmem [shape: bf16[32,128], index: 2, kind: input, shape index: {}]
  %s3 = inlined_call_operand.vmem [shape: bf16[32,128], index: 3, kind: output, shape index: {}]
  %s4 = sld [smem:[#allocation0]]
  $region22: #{_loss.11} parent=0
    _
  %s6 = ssub.s32 1, %s4
  %s7 = scalar_select 0, %s6, %s4
  // Predicated region
  $region2: #{_loss.11} parent=0 // pred_check
    _
  $region3: #{_loss.11} parent=0 // pred_check_branch
    %9 = sbr.rel (0) target = $region5
  $region4: #{_loss.11} parent=0 // pred_region
    _
  $region5: #{_loss.11} parent=0 // pred_fallthru
    _
  // Predicated region
  $region6: #{_loss.11} parent=0 // pred_check
    _
  $region7: #{_loss.11} parent=0 // pred_check_branch
    %11 = sbr.rel (0) target = $region9
  $region8: #{_loss.11} parent=0 // pred_region
    _
  $region9: #{_loss.11} parent=0 // pred_fallthru
    _
  // Predicated region
  $region10: #{_loss.11} parent=0 // pred_check
    _
  $region11: #{_loss.11} parent=0 // pred_check_branch
    %13 = sbr.rel (0) target = $region13
  $region12: #{_loss.11} parent=0 // pred_region
    _
  $region13: #{_loss.11} parent=0 // pred_fallthru
    _
  %v14 = vld [vmem:[%s0] sm:$0xf]
  %v15 = vld [vmem:[%s0 + $0x4] sm:$0xf]
  %v16 = vld [vmem:[%s0 + $0x8] sm:$0xf]
  %v17 = vld [vmem:[%s0 + $0xc] sm:$0xf]
  %v18 = vld [vmem:[%s1] sm:$0xf]
  %v19 = vld [vmem:[%s1 + $0x4] sm:$0xf]
  %v20 = vld [vmem:[%s1 + $0x8] sm:$0xf]
  %v21 = vld [vmem:[%s1 + $0xc] sm:$0xf]
  %v22 = vmax.bf16 %v14, %v18
  %v23 = vmax.bf16 %v15, %v19
  %v24 = vmax.bf16 %v16, %v20
  %v25 = vmax.bf16 %v17, %v21
  %v26 = vld [vmem:[%s2] sm:$0xf]
  %v27 = vld [vmem:[%s2 + $0x4] sm:$0xf]
  %v28 = vld [vmem:[%s2 + $0x8] sm:$0xf]
  %v29 = vld [vmem:[%s2 + $0xc] sm:$0xf]
  %v30 = vmax.bf16 %v22, %v26
  %v31 = vmax.bf16 %v23, %v27
  %v32 = vmax.bf16 %v24, %v28
  %v33 = vmax.bf16 %v25, %v29
  %34 = vst [vmem:[%s3] sm:$0xf] %v30
  %35 = vst [vmem:[%s3 + $0x4] sm:$0xf] %v31
  %36 = vst [vmem:[%s3 + $0x8] sm:$0xf] %v32
  %37 = vst [vmem:[%s3 + $0xc] sm:$0xf] %v33
  // Predicated region
  $region14: #{_loss.11} parent=0 // pred_check
    _
  $region15: #{_loss.11} parent=0 // pred_check_branch
    %39 = sbr.rel (0) target = $region17
  $region16: #{_loss.11} parent=0 // pred_region
    _
  $region17: #{_loss.11} parent=0 // pred_fallthru
    _
  // Predicated region
  $region18: #{_loss.11} parent=0 // pred_check
    _
  $region19: #{_loss.11} parent=0 // pred_check_branch
    %41 = sbr.rel (0) target = $region21
  $region20: #{_loss.11} parent=0 // pred_region
    _
  $region21: #{_loss.11} parent=0 // pred_fallthru
    _

// kernel: _loss.13
$region0: #{_loss.13}
  #allocation0 [shape = 'u32[]', space=smem, size = 0x4, offset = 0x4, fixed_abs, tag = 'smem constant byte address 0x4 - core index']
  #allocation1 [shape = 'u32[144,128]{1,0:T(1,128)}', space=vmem, size = 0x12000, scoped, tag = 'internal scratch']
  %s0 = inlined_call_operand.vmem [shape: bf16[64,576], index: 0, kind: input, shape index: {}]
  %s1 = inlined_call_operand.vmem [shape: bf16[576,64], index: 1, kind: input, shape index: {}]
  %s2 = inlined_call_operand.vmem [shape: f32[1,64], index: 2, kind: input, shape index: {}]
  %s3 = inlined_call_operand.vmem [shape: bf16[64,64], index: 3, kind: input, shape index: {}]
  %s4 = inlined_call_operand.vmem [shape: bf16[64,64], index: 4, kind: output, shape index: {}]
  %s5 = sld [smem:[#allocation0]]
  $region26: #{_loss.13} parent=0
    _
  %s7 = ssub.s32 1, %s5
  %s8 = scalar_select 0, %s7, %s5
  // Predicated region
  $region2: #{_loss.13} parent=0 // pred_check
    _
  $region3: #{_loss.13} parent=0 // pred_check_branch
    %10 = sbr.rel (0) target = $region5
  $region4: #{_loss.13} parent=0 // pred_region
    _
  $region5: #{_loss.13} parent=0 // pred_fallthru
    _
  // Predicated region
  $region6: #{_loss.13} parent=0 // pred_check
    _
  $region7: #{_loss.13} parent=0 // pred_check_branch
    %12 = sbr.rel (0) target = $region9
  $region8: #{_loss.13} parent=0 // pred_region
    _
  $region9: #{_loss.13} parent=0 // pred_fallthru
    _
  // Predicated region
  $region10: #{_loss.13} parent=0 // pred_check
    _
  $region11: #{_loss.13} parent=0 // pred_check_branch
    %14 = sbr.rel (0) target = $region13
  $region12: #{_loss.13} parent=0 // pred_region
    _
  $region13: #{_loss.13} parent=0 // pred_fallthru
    _
  // Predicated region
  $region14: #{_loss.13} parent=0 // pred_check
    _
  $region15: #{_loss.13} parent=0 // pred_check_branch
    %16 = sbr.rel (0) target = $region17
  $region16: #{_loss.13} parent=0 // pred_region
    _
  $region17: #{_loss.13} parent=0 // pred_fallthru
    _
  %v18 = vld [vmem:[%s0] sm:$0xff]
  %v19 = vld [vmem:[%s0 + $0x8] sm:$0xff]
  %v20 = vld [vmem:[%s0 + $0x10] sm:$0xf]
  %v21 = vld [vmem:[%s0 + $0x14] sm:$0xff]
  %v22 = vld [vmem:[%s0 + $0x1c] sm:$0xff]
  %v23 = vld [vmem:[%s0 + $0x24] sm:$0xf]
  %v24 = vld [vmem:[%s0 + $0x28] sm:$0xff]
  %v25 = vld [vmem:[%s0 + $0x30] sm:$0xff]
  %v26 = vld [vmem:[%s0 + $0x38] sm:$0xf]
  %v27 = vld [vmem:[%s0 + $0x3c] sm:$0xff]
  %v28 = vld [vmem:[%s0 + $0x44] sm:$0xff]
  %v29 = vld [vmem:[%s0 + $0x4c] sm:$0xf]
  %v30 = vld [vmem:[%s0 + $0x50] sm:$0xff]
  %v31 = vld [vmem:[%s0 + $0x58] sm:$0xff]
  %v32 = vld [vmem:[%s0 + $0x60] sm:$0xf]
  %v33 = vld [vmem:[%s0 + $0x64] sm:$0xff]
  %v34 = vld [vmem:[%s0 + $0x6c] sm:$0xff]
  %v35 = vld [vmem:[%s0 + $0x74] sm:$0xf]
  %v36 = vld [vmem:[%s0 + $0x78] sm:$0xff]
  %v37 = vld [vmem:[%s0 + $0x80] sm:$0xff]
  %v38 = vld [vmem:[%s0 + $0x88] sm:$0xf]
  %v39 = vld [vmem:[%s0 + $0x8c] sm:$0xff]
  %v40 = vld [vmem:[%s0 + $0x94] sm:$0xff]
  %v41 = vld [vmem:[%s0 + $0x9c] sm:$0xf]
  %v42 = vld [vmem:[%s1] sm:$0xf]
  %v43 = vld [vmem:[%s1 + $0x4] sm:$0xf]
  %v44 = vld [vmem:[%s1 + $0x8] sm:$0xf]
  %v45 = vld [vmem:[%s1 + $0xc] sm:$0xf]
  %v46 = vld [vmem:[%s1 + $0x10] sm:$0xf]
  %v47 = vld [vmem:[%s1 + $0x14] sm:$0xf]
  %v48 = vld [vmem:[%s1 + $0x18] sm:$0xf]
  %v49 = vld [vmem:[%s1 + $0x1c] sm:$0xf]
  %v50 = vld [vmem:[%s1 + $0x20] sm:$0xf]
  %v51 = vld [vmem:[%s1 + $0x24] sm:$0xf]
  %v52 = vld [vmem:[%s1 + $0x28] sm:$0xf]
  %v53 = vld [vmem:[%s1 + $0x2c] sm:$0xf]
  %v54 = vld [vmem:[%s1 + $0x30] sm:$0xf]
  %v55 = vld [vmem:[%s1 + $0x34] sm:$0xf]
  %v56 = vld [vmem:[%s1 + $0x38] sm:$0xf]
  %v57 = vld [vmem:[%s1 + $0x3c] sm:$0xf]
  %v58 = vld [vmem:[%s1 + $0x40] sm:$0xf]
  %v59 = vld [vmem:[%s1 + $0x44] sm:$0xf]
  %v60 = vld [vmem:[%s1 + $0x48] sm:$0xf]
  %v61 = vld [vmem:[%s1 + $0x4c] sm:$0xf]
  %v62 = vld [vmem:[%s1 + $0x50] sm:$0xf]
  %v63 = vld [vmem:[%s1 + $0x54] sm:$0xf]
  %v64 = vld [vmem:[%s1 + $0x58] sm:$0xf]
  %v65 = vld [vmem:[%s1 + $0x5c] sm:$0xf]
  %v66 = vld [vmem:[%s1 + $0x60] sm:$0xf]
  %v67 = vld [vmem:[%s1 + $0x64] sm:$0xf]
  %v68 = vld [vmem:[%s1 + $0x68] sm:$0xf]
  %v69 = vld [vmem:[%s1 + $0x6c] sm:$0xf]
  %v70 = vld [vmem:[%s1 + $0x70] sm:$0xf]
  %v71 = vld [vmem:[%s1 + $0x74] sm:$0xf]
  %v72 = vld [vmem:[%s1 + $0x78] sm:$0xf]
  %v73 = vld [vmem:[%s1 + $0x7c] sm:$0xf]
  %v74 = vld [vmem:[%s1 + $0x80] sm:$0xf]
  %v75 = vld [vmem:[%s1 + $0x84] sm:$0xf]
  %v76 = vld [vmem:[%s1 + $0x88] sm:$0xf]
  %v77 = vld [vmem:[%s1 + $0x8c] sm:$0xf]
  %v78 = vld [vmem:[%s1 + $0x90] sm:$0xf]
  %v79 = vld [vmem:[%s1 + $0x94] sm:$0xf]
  %v80 = vld [vmem:[%s1 + $0x98] sm:$0xf]
  %v81 = vld [vmem:[%s1 + $0x9c] sm:$0xf]
  %v82 = vld [vmem:[%s1 + $0xa0] sm:$0xf]
  %v83 = vld [vmem:[%s1 + $0xa4] sm:$0xf]
  %v84 = vld [vmem:[%s1 + $0xa8] sm:$0xf]
  %v85 = vld [vmem:[%s1 + $0xac] sm:$0xf]
  %v86 = vld [vmem:[%s1 + $0xb0] sm:$0xf]
  %v87 = vld [vmem:[%s1 + $0xb4] sm:$0xf]
  %v88 = vld [vmem:[%s1 + $0xb8] sm:$0xf]
  %v89 = vld [vmem:[%s1 + $0xbc] sm:$0xf]
  %v90 = vld [vmem:[%s1 + $0xc0] sm:$0xf]
  %v91 = vld [vmem:[%s1 + $0xc4] sm:$0xf]
  %v92 = vld [vmem:[%s1 + $0xc8] sm:$0xf]
  %v93 = vld [vmem:[%s1 + $0xcc] sm:$0xf]
  %v94 = vld [vmem:[%s1 + $0xd0] sm:$0xf]
  %v95 = vld [vmem:[%s1 + $0xd4] sm:$0xf]
  %v96 = vld [vmem:[%s1 + $0xd8] sm:$0xf]
  %v97 = vld [vmem:[%s1 + $0xdc] sm:$0xf]
  %v98 = vld [vmem:[%s1 + $0xe0] sm:$0xf]
  %v99 = vld [vmem:[%s1 + $0xe4] sm:$0xf]
  %v100 = vld [vmem:[%s1 + $0xe8] sm:$0xf]
  %v101 = vld [vmem:[%s1 + $0xec] sm:$0xf]
  %v102 = vld [vmem:[%s1 + $0xf0] sm:$0xf]
  %v103 = vld [vmem:[%s1 + $0xf4] sm:$0xf]
  %v104 = vld [vmem:[%s1 + $0xf8] sm:$0xf]
  %v105 = vld [vmem:[%s1 + $0xfc] sm:$0xf]
  %v106 = vld [vmem:[%s1 + $0x100] sm:$0xf]
  %v107 = vld [vmem:[%s1 + $0x104] sm:$0xf]
  %v108 = vld [vmem:[%s1 + $0x108] sm:$0xf]
  %v109 = vld [vmem:[%s1 + $0x10c] sm:$0xf]
  %v110 = vld [vmem:[%s1 + $0x110] sm:$0xf]
  %v111 = vld [vmem:[%s1 + $0x114] sm:$0xf]
  %v112 = vld [vmem:[%s1 + $0x118] sm:$0xf]
  %v113 = vld [vmem:[%s1 + $0x11c] sm:$0xf]
  %v114 = vld [vmem:[%s2] sm:$0x1]
  %v116 = vlaneseq
  %v117 = vshrl.u32 %v116, 7
  %v118 = vsub.s32 0, %v117
  %v119 = vrot.slane %v114, %v118
  %v145 = vunpack.c.l.b16 %v18
  %v146 = vunpack.c.h.b16 %v18
  %v147 = vunpack.c.l.b16 %v19
  %v148 = vunpack.c.h.b16 %v19
  %v149 = vunpack.c.l.b16 %v20
  %v150 = vunpack.c.l.b16 %v21
  %v151 = vunpack.c.h.b16 %v21
  %v152 = vunpack.c.l.b16 %v22
  %v153 = vunpack.c.h.b16 %v22
  %v154 = vunpack.c.l.b16 %v23
  %v155 = vunpack.c.l.b16 %v24
  %v156 = vunpack.c.h.b16 %v24
  %v157 = vunpack.c.l.b16 %v25
  %v158 = vunpack.c.h.b16 %v25
  %v159 = vunpack.c.l.b16 %v26
  %v160 = vunpack.c.l.b16 %v27
  %v161 = vunpack.c.h.b16 %v27
  %v162 = vunpack.c.l.b16 %v28
  %v163 = vunpack.c.h.b16 %v28
  %v164 = vunpack.c.l.b16 %v29
  %v165 = vunpack.c.l.b16 %v30
  %v166 = vunpack.c.h.b16 %v30
  %v167 = vunpack.c.l.b16 %v31
  %v168 = vunpack.c.h.b16 %v31
  %v169 = vunpack.c.l.b16 %v32
  %v170 = vunpack.c.l.b16 %v33
  %v171 = vunpack.c.h.b16 %v33
  %v172 = vunpack.c.l.b16 %v34
  %v173 = vunpack.c.h.b16 %v34
  %v174 = vunpack.c.l.b16 %v35
  %v175 = vunpack.c.l.b16 %v36
  %v176 = vunpack.c.h.b16 %v36
  %v177 = vunpack.c.l.b16 %v37
  %v178 = vunpack.c.h.b16 %v37
  %v179 = vunpack.c.l.b16 %v38
  %v180 = vunpack.c.l.b16 %v39
  %v181 = vunpack.c.h.b16 %v39
  %v182 = vunpack.c.l.b16 %v40
  %v183 = vunpack.c.h.b16 %v40
  %v184 = vunpack.c.l.b16 %v41
  %v185 = vpack.c.b16 %v150, %v145
  %v186 = vpack.c.b16 %v151, %v146
  %v187 = vpack.c.b16 %v152, %v147
  %v188 = vpack.c.b16 %v153, %v148
  %v189 = vpack.c.b16 %v154, %v149
  %v190 = vpack.c.b16 %v160, %v155
  %v191 = vpack.c.b16 %v161, %v156
  %v192 = vpack.c.b16 %v162, %v157
  %v193 = vpack.c.b16 %v163, %v158
  %v194 = vpack.c.b16 %v164, %v159
  %v195 = vpack.c.b16 %v170, %v165
  %v196 = vpack.c.b16 %v171, %v166
  %v197 = vpack.c.b16 %v172, %v167
  %v198 = vpack.c.b16 %v173, %v168
  %v199 = vpack.c.b16 %v174, %v169
  %v200 = vpack.c.b16 %v180, %v175
  %v201 = vpack.c.b16 %v181, %v176
  %v202 = vpack.c.b16 %v182, %v177
  %v203 = vpack.c.b16 %v183, %v178
  %v204 = vpack.c.b16 %v184, %v179
  %v293 = vunpack.c.l.b16 %v42
  %v294 = vunpack.c.l.b16 %v43
  %v295 = vunpack.c.l.b16 %v44
  %v296 = vunpack.c.l.b16 %v45
  %v297 = vunpack.c.l.b16 %v46
  %v298 = vunpack.c.l.b16 %v47
  %v299 = vunpack.c.l.b16 %v48
  %v300 = vunpack.c.l.b16 %v49
  %v301 = vunpack.c.l.b16 %v50
  %v302 = vunpack.c.l.b16 %v51
  %v303 = vunpack.c.l.b16 %v52
  %v304 = vunpack.c.l.b16 %v53
  %v305 = vunpack.c.l.b16 %v54
  %v306 = vunpack.c.l.b16 %v55
  %v307 = vunpack.c.l.b16 %v56
  %v308 = vunpack.c.l.b16 %v57
  %v309 = vunpack.c.l.b16 %v58
  %v310 = vunpack.c.l.b16 %v59
  %v311 = vunpack.c.l.b16 %v60
  %v312 = vunpack.c.l.b16 %v61
  %v313 = vunpack.c.l.b16 %v62
  %v314 = vunpack.c.l.b16 %v63
  %v315 = vunpack.c.l.b16 %v64
  %v316 = vunpack.c.l.b16 %v65
  %v317 = vunpack.c.l.b16 %v66
  %v318 = vunpack.c.l.b16 %v67
  %v319 = vunpack.c.l.b16 %v68
  %v320 = vunpack.c.l.b16 %v69
  %v321 = vunpack.c.l.b16 %v70
  %v322 = vunpack.c.l.b16 %v71
  %v323 = vunpack.c.l.b16 %v72
  %v324 = vunpack.c.l.b16 %v73
  %v325 = vunpack.c.l.b16 %v74
  %v326 = vunpack.c.l.b16 %v75
  %v327 = vunpack.c.l.b16 %v76
  %v328 = vunpack.c.l.b16 %v77
  %v329 = vunpack.c.l.b16 %v78
  %v330 = vunpack.c.l.b16 %v79
  %v331 = vunpack.c.l.b16 %v80
  %v332 = vunpack.c.l.b16 %v81
  %v333 = vunpack.c.l.b16 %v82
  %v334 = vunpack.c.l.b16 %v83
  %v335 = vunpack.c.l.b16 %v84
  %v336 = vunpack.c.l.b16 %v85
  %v337 = vunpack.c.l.b16 %v86
  %v338 = vunpack.c.l.b16 %v87
  %v339 = vunpack.c.l.b16 %v88
  %v340 = vunpack.c.l.b16 %v89
  %v341 = vunpack.c.l.b16 %v90
  %v342 = vunpack.c.l.b16 %v91
  %v343 = vunpack.c.l.b16 %v92
  %v344 = vunpack.c.l.b16 %v93
  %v345 = vunpack.c.l.b16 %v94
  %v346 = vunpack.c.l.b16 %v95
  %v347 = vunpack.c.l.b16 %v96
  %v348 = vunpack.c.l.b16 %v97
  %v349 = vunpack.c.l.b16 %v98
  %v350 = vunpack.c.l.b16 %v99
  %v351 = vunpack.c.l.b16 %v100
  %v352 = vunpack.c.l.b16 %v101
  %v353 = vunpack.c.l.b16 %v102
  %v354 = vunpack.c.l.b16 %v103
  %v355 = vunpack.c.l.b16 %v104
  %v356 = vunpack.c.l.b16 %v105
  %v357 = vunpack.c.l.b16 %v106
  %v358 = vunpack.c.l.b16 %v107
  %v359 = vunpack.c.l.b16 %v108
  %v360 = vunpack.c.l.b16 %v109
  %v361 = vunpack.c.l.b16 %v110
  %v362 = vunpack.c.l.b16 %v111
  %v363 = vunpack.c.l.b16 %v112
  %v364 = vunpack.c.l.b16 %v113
  %v365 = vpack.c.b16 %v294, %v293
  %v366 = vpack.c.b16 %v296, %v295
  %v367 = vpack.c.b16 %v298, %v297
  %v368 = vpack.c.b16 %v300, %v299
  %v369 = vpack.c.b16 %v302, %v301
  %v370 = vpack.c.b16 %v304, %v303
  %v371 = vpack.c.b16 %v306, %v305
  %v372 = vpack.c.b16 %v308, %v307
  %v373 = vpack.c.b16 %v310, %v309
  %v374 = vpack.c.b16 %v312, %v311
  %v375 = vpack.c.b16 %v314, %v313
  %v376 = vpack.c.b16 %v316, %v315
  %v377 = vpack.c.b16 %v318, %v317
  %v378 = vpack.c.b16 %v320, %v319
  %v379 = vpack.c.b16 %v322, %v321
  %v380 = vpack.c.b16 %v324, %v323
  %v381 = vpack.c.b16 %v326, %v325
  %v382 = vpack.c.b16 %v328, %v327
  %v383 = vpack.c.b16 %v330, %v329
  %v384 = vpack.c.b16 %v332, %v331
  %v385 = vpack.c.b16 %v334, %v333
  %v386 = vpack.c.b16 %v336, %v335
  %v387 = vpack.c.b16 %v338, %v337
  %v388 = vpack.c.b16 %v340, %v339
  %v389 = vpack.c.b16 %v342, %v341
  %v390 = vpack.c.b16 %v344, %v343
  %v391 = vpack.c.b16 %v346, %v345
  %v392 = vpack.c.b16 %v348, %v347
  %v393 = vpack.c.b16 %v350, %v349
  %v394 = vpack.c.b16 %v352, %v351
  %v395 = vpack.c.b16 %v354, %v353
  %v396 = vpack.c.b16 %v356, %v355
  %v397 = vpack.c.b16 %v358, %v357
  %v398 = vpack.c.b16 %v360, %v359
  %v399 = vpack.c.b16 %v362, %v361
  %v400 = vpack.c.b16 %v364, %v363
  %vm437 = vcmask 523264
  %v439 = vsel %vm437, %v189, 0
  %v442 = vsel %vm437, %v194, 0
  %v445 = vsel %vm437, %v199, 0
  %v448 = vsel %vm437, %v204, 0
  %450 = vmatprep.subr.bf16.mxu0 0
  %451 = vmatpush1.bf16.msra.mxu0 %v365
  %452 = vmatprep.subr.bf16.mxu0 0
  %453 = vmatpush1.bf16.msra.mxu0 %v366
  %454 = vmatprep.subr.bf16.mxu0 0
  %455 = vmatpush1.bf16.msra.mxu0 %v367
  %456 = vmatprep.subr.bf16.mxu0 0
  %457 = vmatpush1.bf16.msra.mxu0 %v368
  %458 = vmatprep.subr.bf16.mxu0 0
  %459 = vmatpush1.bf16.msra.mxu0 %v369
  %460 = vmatprep.subr.bf16.mxu0 0
  %461 = vmatpush1.bf16.msra.mxu0 %v370
  %462 = vmatprep.subr.bf16.mxu0 0
  %463 = vmatpush1.bf16.msra.mxu0 %v371
  %464 = vmatprep.subr.bf16.mxu0 0
  %465 = vmatpush1.bf16.msra.mxu0 %v372
  %466 = vmatprep.subr.bf16.mxu0 0
  %467 = vmatpush1.bf16.msra.mxu0 %v373
  %468 = vmatprep.subr.bf16.mxu0 0
  %469 = vmatpush1.bf16.msra.mxu0 %v374
  %470 = vmatprep.subr.bf16.mxu0 0
  %471 = vmatpush1.bf16.msra.mxu0 %v375
  %472 = vmatprep.subr.bf16.mxu0 0
  %473 = vmatpush1.bf16.msra.mxu0 %v376
  %474 = vmatprep.subr.bf16.mxu0 0
  %475 = vmatpush1.bf16.msra.mxu0 %v377
  %476 = vmatprep.subr.bf16.mxu0 0
  %477 = vmatpush1.bf16.msra.mxu0 %v378
  %478 = vmatprep.subr.bf16.mxu0 0
  %479 = vmatpush1.bf16.msra.mxu0 %v379
  %480 = vmatprep.subr.bf16.mxu0 0
  %481 = vmatpush1.bf16.msra.mxu0 %v380
  %482 = vmatprep.mubr.bf16.mxu0 %v186
  %483 = vmatmul.mubr.bf16.gmra.mrb[0].mxu0 %v185
  %v484 = vpop.f32.mrb[0].mxu0
  %v485 = vadd.f32 %v119, %v484
  %v486 = vpop.f32.mrb[0].mxu0
  %v487 = vpop.f32.mrb[0].mxu0
  %v488 = vadd.f32 %v119, %v487
  %v489 = vpop.f32.mrb[0].mxu0
  %490 = vmatprep.mubr.bf16.mxu0 %v191
  %491 = vmatmul.mubr.bf16.gmra.mrb[0].mxu0 %v190
  %v492 = vpop.f32.mrb[0].mxu0
  %v493 = vadd.f32 %v119, %v492
  %v494 = vpop.f32.mrb[0].mxu0
  %v495 = vpop.f32.mrb[0].mxu0
  %v496 = vadd.f32 %v119, %v495
  %v497 = vpop.f32.mrb[0].mxu0
  %498 = vmatprep.mubr.bf16.mxu0 %v196
  %499 = vmatmul.mubr.bf16.gmra.mrb[0].mxu0 %v195
  %v500 = vpop.f32.mrb[0].mxu0
  %v501 = vadd.f32 %v119, %v500
  %v502 = vpop.f32.mrb[0].mxu0
  %v503 = vpop.f32.mrb[0].mxu0
  %v504 = vadd.f32 %v119, %v503
  %v505 = vpop.f32.mrb[0].mxu0
  %506 = vmatprep.mubr.bf16.mxu0 %v201
  %507 = vmatmul.mubr.bf16.gmra.mrb[0].mxu0 %v200
  %v508 = vpop.f32.mrb[0].mxu0
  %v509 = vadd.f32 %v119, %v508
  %v510 = vpop.f32.mrb[0].mxu0
  %v511 = vpop.f32.mrb[0].mxu0
  %v512 = vadd.f32 %v119, %v511
  %v513 = vpop.f32.mrb[0].mxu0
  %514 = vdwg.mxu0
  %515 = vmatprep.subr.bf16.mxu0 0
  %516 = vmatpush1.bf16.msra.mxu0 %v381
  %517 = vmatprep.subr.bf16.mxu0 0
  %518 = vmatpush1.bf16.msra.mxu0 %v382
  %519 = vmatprep.subr.bf16.mxu0 0
  %520 = vmatpush1.bf16.msra.mxu0 %v383
  %521 = vmatprep.subr.bf16.mxu0 0
  %522 = vmatpush1.bf16.msra.mxu0 %v384
  %523 = vmatprep.subr.bf16.mxu0 0
  %524 = vmatpush1.bf16.msra.mxu0 %v385
  %525 = vmatprep.subr.bf16.mxu0 0
  %526 = vmatpush1.bf16.msra.mxu0 %v386
  %527 = vmatprep.subr.bf16.mxu0 0
  %528 = vmatpush1.bf16.msra.mxu0 %v387
  %529 = vmatprep.subr.bf16.mxu0 0
  %530 = vmatpush1.bf16.msra.mxu0 %v388
  %531 = vmatprep.subr.bf16.mxu0 0
  %532 = vmatpush1.bf16.msra.mxu0 %v389
  %533 = vmatprep.subr.bf16.mxu0 0
  %534 = vmatpush1.bf16.msra.mxu0 %v390
  %535 = vmatprep.subr.bf16.mxu0 0
  %536 = vmatpush1.bf16.msra.mxu0 %v391
  %537 = vmatprep.subr.bf16.mxu0 0
  %538 = vmatpush1.bf16.msra.mxu0 %v392
  %539 = vmatprep.subr.bf16.mxu0 0
  %540 = vmatpush1.bf16.msra.mxu0 %v393
  %541 = vmatprep.subr.bf16.mxu0 0
  %542 = vmatpush1.bf16.msra.mxu0 %v394
  %543 = vmatprep.subr.bf16.mxu0 0
  %544 = vmatpush1.bf16.msra.mxu0 %v395
  %545 = vmatprep.subr.bf16.mxu0 0
  %546 = vmatpush1.bf16.msra.mxu0 %v396
  %547 = vmatprep.mubr.bf16.mxu0 %v188
  %548 = vmatmul.mubr.bf16.gmra.mrb[0].mxu0 %v187
  %v549 = vpop.f32.mrb[0].mxu0
  %v550 = vadd.f32 %v485, %v549
  %v551 = vpop.f32.mrb[0].mxu0
  %v552 = vpop.f32.mrb[0].mxu0
  %v553 = vadd.f32 %v488, %v552
  %v554 = vpop.f32.mrb[0].mxu0
  %555 = vmatprep.mubr.bf16.mxu0 %v193
  %556 = vmatmul.mubr.bf16.gmra.mrb[0].mxu0 %v192
  %v557 = vpop.f32.mrb[0].mxu0
  %v558 = vadd.f32 %v493, %v557
  %v559 = vpop.f32.mrb[0].mxu0
  %v560 = vpop.f32.mrb[0].mxu0
  %v561 = vadd.f32 %v496, %v560
  %v562 = vpop.f32.mrb[0].mxu0
  %563 = vmatprep.mubr.bf16.mxu0 %v198
  %564 = vmatmul.mubr.bf16.gmra.mrb[0].mxu0 %v197
  %v565 = vpop.f32.mrb[0].mxu0
  %v566 = vadd.f32 %v501, %v565
  %v567 = vpop.f32.mrb[0].mxu0
  %v568 = vpop.f32.mrb[0].mxu0
  %v569 = vadd.f32 %v504, %v568
  %v570 = vpop.f32.mrb[0].mxu0
  %571 = vmatprep.mubr.bf16.mxu0 %v203
  %572 = vmatmul.mubr.bf16.gmra.mrb[0].mxu0 %v202
  %v573 = vpop.f32.mrb[0].mxu0
  %v574 = vadd.f32 %v509, %v573
  %v575 = vpop.f32.mrb[0].mxu0
  %v576 = vpop.f32.mrb[0].mxu0
  %v577 = vadd.f32 %v512, %v576
  %v578 = vpop.f32.mrb[0].mxu0
  %579 = vdwg.mxu0
  %580 = vmatprep.subr.bf16.mxu0 0
  %581 = vmatpush1.bf16.msra.mxu0 %v397
  %582 = vmatprep.subr.bf16.mxu0 0
  %583 = vmatpush1.bf16.msra.mxu0 %v398
  %584 = vmatprep.subr.bf16.mxu0 0
  %585 = vmatpush1.bf16.msra.mxu0 %v399
  %586 = vmatprep.subr.bf16.mxu0 0
  %587 = vmatpush1.bf16.msra.mxu0 %v400
  %588 = vmatprep.subr.bf16.mxu0 0
  %589 = vmatpush1.bf16.msra.mxu0 0
  %590 = vmatprep.subr.bf16.mxu0 0
  %591 = vmatpush1.bf16.msra.mxu0 0
  %592 = vmatprep.subr.bf16.mxu0 0
  %593 = vmatpush1.bf16.msra.mxu0 0
  %594 = vmatprep.subr.bf16.mxu0 0
  %595 = vmatpush1.bf16.msra.mxu0 0
  %596 = vmatprep.subr.bf16.mxu0 0
  %597 = vmatpush1.bf16.msra.mxu0 0
  %598 = vmatprep.subr.bf16.mxu0 0
  %599 = vmatpush1.bf16.msra.mxu0 0
  %600 = vmatprep.subr.bf16.mxu0 0
  %601 = vmatpush1.bf16.msra.mxu0 0
  %602 = vmatprep.subr.bf16.mxu0 0
  %603 = vmatpush1.bf16.msra.mxu0 0
  %604 = vmatprep.subr.bf16.mxu0 0
  %605 = vmatpush1.bf16.msra.mxu0 0
  %606 = vmatprep.subr.bf16.mxu0 0
  %607 = vmatpush1.bf16.msra.mxu0 0
  %608 = vmatprep.subr.bf16.mxu0 0
  %609 = vmatpush1.bf16.msra.mxu0 0
  %610 = vmatprep.subr.bf16.mxu0 0
  %611 = vmatpush1.bf16.msra.mxu0 0
  %612 = vmatprep.mubr.bf16.mxu0 0
  %613 = vmatmul.mubr.bf16.gmra.mrb[0].mxu0 %v439
  %v614 = vpop.f32.mrb[0].mxu0
  %v615 = vadd.f32 %v550, %v614
  %v616 = vpop.f32.mrb[0].mxu0
  %v617 = vpop.f32.mrb[0].mxu0
  %v618 = vadd.f32 %v553, %v617
  %v619 = vpop.f32.mrb[0].mxu0
  %620 = vmatprep.mubr.bf16.mxu0 0
  %621 = vmatmul.mubr.bf16.gmra.mrb[0].mxu0 %v442
  %v622 = vpop.f32.mrb[0].mxu0
  %v623 = vadd.f32 %v558, %v622
  %v624 = vpop.f32.mrb[0].mxu0
  %v625 = vpop.f32.mrb[0].mxu0
  %v626 = vadd.f32 %v561, %v625
  %v627 = vpop.f32.mrb[0].mxu0
  %628 = vmatprep.mubr.bf16.mxu0 0
  %629 = vmatmul.mubr.bf16.gmra.mrb[0].mxu0 %v445
  %v630 = vpop.f32.mrb[0].mxu0
  %v631 = vadd.f32 %v566, %v630
  %v632 = vpop.f32.mrb[0].mxu0
  %v633 = vpop.f32.mrb[0].mxu0
  %v634 = vadd.f32 %v569, %v633
  %v635 = vpop.f32.mrb[0].mxu0
  %636 = vmatprep.mubr.bf16.mxu0 0
  %637 = vmatmul.mubr.bf16.gmra.mrb[0].mxu0 %v448
  %v638 = vpop.f32.mrb[0].mxu0
  %v639 = vadd.f32 %v574, %v638
  %v640 = vpop.f32.mrb[0].mxu0
  %v641 = vpop.f32.mrb[0].mxu0
  %v642 = vadd.f32 %v577, %v641
  %v643 = vpop.f32.mrb[0].mxu0
  %644 = vdwg.mxu0
  %v645 = vld [vmem:[%s3] sm:$0xf]
  %v646 = vld [vmem:[%s3 + $0x4] sm:$0xf]
  %v647 = vld [vmem:[%s3 + $0x8] sm:$0xf]
  %v648 = vld [vmem:[%s3 + $0xc] sm:$0xf]
  %v649 = vld [vmem:[%s3 + $0x10] sm:$0xf]
  %v650 = vld [vmem:[%s3 + $0x14] sm:$0xf]
  %v651 = vld [vmem:[%s3 + $0x18] sm:$0xf]
  %v652 = vld [vmem:[%s3 + $0x1c] sm:$0xf]
  %v653 = vunpack.c.l.bf16 %v645
  %v654 = vunpack.c.l.bf16 %v646
  %v655 = vunpack.c.l.bf16 %v647
  %v656 = vunpack.c.l.bf16 %v648
  %v657 = vunpack.c.l.bf16 %v649
  %v658 = vunpack.c.l.bf16 %v650
  %v659 = vunpack.c.l.bf16 %v651
  %v660 = vunpack.c.l.bf16 %v652
  %v661 = vadd.f32 %v615, %v653
  %v662 = vadd.f32 %v618, %v654
  %v663 = vadd.f32 %v623, %v655
  %v664 = vadd.f32 %v626, %v656
  %v665 = vadd.f32 %v631, %v657
  %v666 = vadd.f32 %v634, %v658
  %v667 = vadd.f32 %v639, %v659
  %v668 = vadd.f32 %v642, %v660
  %v669 = vmax.f32 %v661, 0.0
  %v670 = vmax.f32 %v662, 0.0
  %v671 = vmax.f32 %v663, 0.0
  %v672 = vmax.f32 %v664, 0.0
  %v673 = vmax.f32 %v665, 0.0
  %v674 = vmax.f32 %v666, 0.0
  %v675 = vmax.f32 %v667, 0.0
  %v676 = vmax.f32 %v668, 0.0
  %v677 = vpack.c.bf16 %v670, %v669
  %v678 = vpack.c.bf16 %v672, %v671
  %v679 = vpack.c.bf16 %v674, %v673
  %v680 = vpack.c.bf16 %v676, %v675
  %v685 = vunpack.c.l.b16 %v677
  %v686 = vunpack.c.h.b16 %v677
  %v687 = vunpack.c.l.b16 %v678
  %v688 = vunpack.c.h.b16 %v678
  %v689 = vunpack.c.l.b16 %v679
  %v690 = vunpack.c.h.b16 %v679
  %v691 = vunpack.c.l.b16 %v680
  %v692 = vunpack.c.h.b16 %v680
  %v693 = vpack.c.b16 %v685, %v685
  %v694 = vpack.c.b16 %v686, %v686
  %v695 = vpack.c.b16 %v687, %v687
  %v696 = vpack.c.b16 %v688, %v688
  %v697 = vpack.c.b16 %v689, %v689
  %v698 = vpack.c.b16 %v690, %v690
  %v699 = vpack.c.b16 %v691, %v691
  %v700 = vpack.c.b16 %v692, %v692
  %vm709 = vcmask 519168
  %710 = vst.msk [vmem:[%s4] sm:$0xf] %vm709, %v693
  %711 = vst.msk [vmem:[%s4 + $0x4] sm:$0xf] %vm709, %v694
  %712 = vst.msk [vmem:[%s4 + $0x8] sm:$0xf] %vm709, %v695
  %713 = vst.msk [vmem:[%s4 + $0xc] sm:$0xf] %vm709, %v696
  %714 = vst.msk [vmem:[%s4 + $0x10] sm:$0xf] %vm709, %v697
  %715 = vst.msk [vmem:[%s4 + $0x14] sm:$0xf] %vm709, %v698
  %716 = vst.msk [vmem:[%s4 + $0x18] sm:$0xf] %vm709, %v699
  %717 = vst.msk [vmem:[%s4 + $0x1c] sm:$0xf] %vm709, %v700
  // Predicated region
  $region18: #{_loss.13} parent=0 // pred_check
    _
  $region19: #{_loss.13} parent=0 // pred_check_branch
    %719 = sbr.rel (0) target = $region21
  $region20: #{_loss.13} parent=0 // pred_region
    _
  $region21: #{_loss.13} parent=0 // pred_fallthru
    _
  // Predicated region
  $region22: #{_loss.13} parent=0 // pred_check
    _
  $region23: #{_loss.13} parent=0 // pred_check_branch
    %721 = sbr.rel (0) target = $region25
  $region24: #{_loss.13} parent=0 // pred_region
    _
  $region25: #{_loss.13} parent=0 // pred_fallthru
    _

// kernel: _loss.12
$region0: #{_loss.12}
  #allocation0 [shape = 'u32[]', space=smem, size = 0x4, offset = 0x4, fixed_abs, tag = 'smem constant byte address 0x4 - core index']
  #allocation1 [shape = 'u32[144,128]{1,0:T(1,128)}', space=vmem, size = 0x12000, scoped, tag = 'internal scratch']
  %s0 = inlined_call_operand.vmem [shape: bf16[64,576], index: 0, kind: input, shape index: {}]
  %s1 = inlined_call_operand.vmem [shape: bf16[576,64], index: 1, kind: input, shape index: {}]
  %s2 = inlined_call_operand.vmem [shape: f32[1,64], index: 2, kind: input, shape index: {}]
  %s3 = inlined_call_operand.vmem [shape: bf16[64,64], index: 3, kind: output, shape index: {}]
  %s4 = sld [smem:[#allocation0]]
  $region22: #{_loss.12} parent=0
    _
  %s6 = ssub.s32 1, %s4
  %s7 = scalar_select 0, %s6, %s4
  // Predicated region
  $region2: #{_loss.12} parent=0 // pred_check
    _
  $region3: #{_loss.12} parent=0 // pred_check_branch
    %9 = sbr.rel (0) target = $region5
  $region4: #{_loss.12} parent=0 // pred_region
    _
  $region5: #{_loss.12} parent=0 // pred_fallthru
    _
  // Predicated region
  $region6: #{_loss.12} parent=0 // pred_check
    _
  $region7: #{_loss.12} parent=0 // pred_check_branch
    %11 = sbr.rel (0) target = $region9
  $region8: #{_loss.12} parent=0 // pred_region
    _
  $region9: #{_loss.12} parent=0 // pred_fallthru
    _
  // Predicated region
  $region10: #{_loss.12} parent=0 // pred_check
    _
  $region11: #{_loss.12} parent=0 // pred_check_branch
    %13 = sbr.rel (0) target = $region13
  $region12: #{_loss.12} parent=0 // pred_region
    _
  $region13: #{_loss.12} parent=0 // pred_fallthru
    _
  %v15 = vld [vmem:[%s0] sm:$0xff]
  %v16 = vld [vmem:[%s0 + $0x8] sm:$0xff]
  %v17 = vld [vmem:[%s0 + $0x10] sm:$0xf]
  %v18 = vld [vmem:[%s0 + $0x14] sm:$0xff]
  %v19 = vld [vmem:[%s0 + $0x1c] sm:$0xff]
  %v20 = vld [vmem:[%s0 + $0x24] sm:$0xf]
  %v21 = vld [vmem:[%s0 + $0x28] sm:$0xff]
  %v22 = vld [vmem:[%s0 + $0x30] sm:$0xff]
  %v23 = vld [vmem:[%s0 + $0x38] sm:$0xf]
  %v24 = vld [vmem:[%s0 + $0x3c] sm:$0xff]
  %v25 = vld [vmem:[%s0 + $0x44] sm:$0xff]
  %v26 = vld [vmem:[%s0 + $0x4c] sm:$0xf]
  %v27 = vld [vmem:[%s0 + $0x50] sm:$0xff]
  %v28 = vld [vmem:[%s0 + $0x58] sm:$0xff]
  %v29 = vld [vmem:[%s0 + $0x60] sm:$0xf]
  %v30 = vld [vmem:[%s0 + $0x64] sm:$0xff]
  %v31 = vld [vmem:[%s0 + $0x6c] sm:$0xff]
  %v32 = vld [vmem:[%s0 + $0x74] sm:$0xf]
  %v33 = vld [vmem:[%s0 + $0x78] sm:$0xff]
  %v34 = vld [vmem:[%s0 + $0x80] sm:$0xff]
  %v35 = vld [vmem:[%s0 + $0x88] sm:$0xf]
  %v36 = vld [vmem:[%s0 + $0x8c] sm:$0xff]
  %v37 = vld [vmem:[%s0 + $0x94] sm:$0xff]
  %v38 = vld [vmem:[%s0 + $0x9c] sm:$0xf]
  %v39 = vld [vmem:[%s1] sm:$0xf]
  %v40 = vld [vmem:[%s1 + $0x4] sm:$0xf]
  %v41 = vld [vmem:[%s1 + $0x8] sm:$0xf]
  %v42 = vld [vmem:[%s1 + $0xc] sm:$0xf]
  %v43 = vld [vmem:[%s1 + $0x10] sm:$0xf]
  %v44 = vld [vmem:[%s1 + $0x14] sm:$0xf]
  %v45 = vld [vmem:[%s1 + $0x18] sm:$0xf]
  %v46 = vld [vmem:[%s1 + $0x1c] sm:$0xf]
  %v47 = vld [vmem:[%s1 + $0x20] sm:$0xf]
  %v48 = vld [vmem:[%s1 + $0x24] sm:$0xf]
  %v49 = vld [vmem:[%s1 + $0x28] sm:$0xf]
  %v50 = vld [vmem:[%s1 + $0x2c] sm:$0xf]
  %v51 = vld [vmem:[%s1 + $0x30] sm:$0xf]
  %v52 = vld [vmem:[%s1 + $0x34] sm:$0xf]
  %v53 = vld [vmem:[%s1 + $0x38] sm:$0xf]
  %v54 = vld [vmem:[%s1 + $0x3c] sm:$0xf]
  %v55 = vld [vmem:[%s1 + $0x40] sm:$0xf]
  %v56 = vld [vmem:[%s1 + $0x44] sm:$0xf]
  %v57 = vld [vmem:[%s1 + $0x48] sm:$0xf]
  %v58 = vld [vmem:[%s1 + $0x4c] sm:$0xf]
  %v59 = vld [vmem:[%s1 + $0x50] sm:$0xf]
  %v60 = vld [vmem:[%s1 + $0x54] sm:$0xf]
  %v61 = vld [vmem:[%s1 + $0x58] sm:$0xf]
  %v62 = vld [vmem:[%s1 + $0x5c] sm:$0xf]
  %v63 = vld [vmem:[%s1 + $0x60] sm:$0xf]
  %v64 = vld [vmem:[%s1 + $0x64] sm:$0xf]
  %v65 = vld [vmem:[%s1 + $0x68] sm:$0xf]
  %v66 = vld [vmem:[%s1 + $0x6c] sm:$0xf]
  %v67 = vld [vmem:[%s1 + $0x70] sm:$0xf]
  %v68 = vld [vmem:[%s1 + $0x74] sm:$0xf]
  %v69 = vld [vmem:[%s1 + $0x78] sm:$0xf]
  %v70 = vld [vmem:[%s1 + $0x7c] sm:$0xf]
  %v71 = vld [vmem:[%s1 + $0x80] sm:$0xf]
  %v72 = vld [vmem:[%s1 + $0x84] sm:$0xf]
  %v73 = vld [vmem:[%s1 + $0x88] sm:$0xf]
  %v74 = vld [vmem:[%s1 + $0x8c] sm:$0xf]
  %v75 = vld [vmem:[%s1 + $0x90] sm:$0xf]
  %v76 = vld [vmem:[%s1 + $0x94] sm:$0xf]
  %v77 = vld [vmem:[%s1 + $0x98] sm:$0xf]
  %v78 = vld [vmem:[%s1 + $0x9c] sm:$0xf]
  %v79 = vld [vmem:[%s1 + $0xa0] sm:$0xf]
  %v80 = vld [vmem:[%s1 + $0xa4] sm:$0xf]
  %v81 = vld [vmem:[%s1 + $0xa8] sm:$0xf]
  %v82 = vld [vmem:[%s1 + $0xac] sm:$0xf]
  %v83 = vld [vmem:[%s1 + $0xb0] sm:$0xf]
  %v84 = vld [vmem:[%s1 + $0xb4] sm:$0xf]
  %v85 = vld [vmem:[%s1 + $0xb8] sm:$0xf]
  %v86 = vld [vmem:[%s1 + $0xbc] sm:$0xf]
  %v87 = vld [vmem:[%s1 + $0xc0] sm:$0xf]
  %v88 = vld [vmem:[%s1 + $0xc4] sm:$0xf]
  %v89 = vld [vmem:[%s1 + $0xc8] sm:$0xf]
  %v90 = vld [vmem:[%s1 + $0xcc] sm:$0xf]
  %v91 = vld [vmem:[%s1 + $0xd0] sm:$0xf]
  %v92 = vld [vmem:[%s1 + $0xd4] sm:$0xf]
  %v93 = vld [vmem:[%s1 + $0xd8] sm:$0xf]
  %v94 = vld [vmem:[%s1 + $0xdc] sm:$0xf]
  %v95 = vld [vmem:[%s1 + $0xe0] sm:$0xf]
  %v96 = vld [vmem:[%s1 + $0xe4] sm:$0xf]
  %v97 = vld [vmem:[%s1 + $0xe8] sm:$0xf]
  %v98 = vld [vmem:[%s1 + $0xec] sm:$0xf]
  %v99 = vld [vmem:[%s1 + $0xf0] sm:$0xf]
  %v100 = vld [vmem:[%s1 + $0xf4] sm:$0xf]
  %v101 = vld [vmem:[%s1 + $0xf8] sm:$0xf]
  %v102 = vld [vmem:[%s1 + $0xfc] sm:$0xf]
  %v103 = vld [vmem:[%s1 + $0x100] sm:$0xf]
  %v104 = vld [vmem:[%s1 + $0x104] sm:$0xf]
  %v105 = vld [vmem:[%s1 + $0x108] sm:$0xf]
  %v106 = vld [vmem:[%s1 + $0x10c] sm:$0xf]
  %v107 = vld [vmem:[%s1 + $0x110] sm:$0xf]
  %v108 = vld [vmem:[%s1 + $0x114] sm:$0xf]
  %v109 = vld [vmem:[%s1 + $0x118] sm:$0xf]
  %v110 = vld [vmem:[%s1 + $0x11c] sm:$0xf]
  %v111 = vld [vmem:[%s2] sm:$0x1]
  %v113 = vlaneseq
  %v114 = vshrl.u32 %v113, 7
  %v115 = vsub.s32 0, %v114
  %v116 = vrot.slane %v111, %v115
  %v142 = vunpack.c.l.b16 %v15
  %v143 = vunpack.c.h.b16 %v15
  %v144 = vunpack.c.l.b16 %v16
  %v145 = vunpack.c.h.b16 %v16
  %v146 = vunpack.c.l.b16 %v17
  %v147 = vunpack.c.l.b16 %v18
  %v148 = vunpack.c.h.b16 %v18
  %v149 = vunpack.c.l.b16 %v19
  %v150 = vunpack.c.h.b16 %v19
  %v151 = vunpack.c.l.b16 %v20
  %v152 = vunpack.c.l.b16 %v21
  %v153 = vunpack.c.h.b16 %v21
  %v154 = vunpack.c.l.b16 %v22
  %v155 = vunpack.c.h.b16 %v22
  %v156 = vunpack.c.l.b16 %v23
  %v157 = vunpack.c.l.b16 %v24
  %v158 = vunpack.c.h.b16 %v24
  %v159 = vunpack.c.l.b16 %v25
  %v160 = vunpack.c.h.b16 %v25
  %v161 = vunpack.c.l.b16 %v26
  %v162 = vunpack.c.l.b16 %v27
  %v163 = vunpack.c.h.b16 %v27
  %v164 = vunpack.c.l.b16 %v28
  %v165 = vunpack.c.h.b16 %v28
  %v166 = vunpack.c.l.b16 %v29
  %v167 = vunpack.c.l.b16 %v30
  %v168 = vunpack.c.h.b16 %v30
  %v169 = vunpack.c.l.b16 %v31
  %v170 = vunpack.c.h.b16 %v31
  %v171 = vunpack.c.l.b16 %v32
  %v172 = vunpack.c.l.b16 %v33
  %v173 = vunpack.c.h.b16 %v33
  %v174 = vunpack.c.l.b16 %v34
  %v175 = vunpack.c.h.b16 %v34
  %v176 = vunpack.c.l.b16 %v35
  %v177 = vunpack.c.l.b16 %v36
  %v178 = vunpack.c.h.b16 %v36
  %v179 = vunpack.c.l.b16 %v37
  %v180 = vunpack.c.h.b16 %v37
  %v181 = vunpack.c.l.b16 %v38
  %v182 = vpack.c.b16 %v147, %v142
  %v183 = vpack.c.b16 %v148, %v143
  %v184 = vpack.c.b16 %v149, %v144
  %v185 = vpack.c.b16 %v150, %v145
  %v186 = vpack.c.b16 %v151, %v146
  %v187 = vpack.c.b16 %v157, %v152
  %v188 = vpack.c.b16 %v158, %v153
  %v189 = vpack.c.b16 %v159, %v154
  %v190 = vpack.c.b16 %v160, %v155
  %v191 = vpack.c.b16 %v161, %v156
  %v192 = vpack.c.b16 %v167, %v162
  %v193 = vpack.c.b16 %v168, %v163
  %v194 = vpack.c.b16 %v169, %v164
  %v195 = vpack.c.b16 %v170, %v165
  %v196 = vpack.c.b16 %v171, %v166
  %v197 = vpack.c.b16 %v177, %v172
  %v198 = vpack.c.b16 %v178, %v173
  %v199 = vpack.c.b16 %v179, %v174
  %v200 = vpack.c.b16 %v180, %v175
  %v201 = vpack.c.b16 %v181, %v176
  %v290 = vunpack.c.l.b16 %v39
  %v291 = vunpack.c.l.b16 %v40
  %v292 = vunpack.c.l.b16 %v41
  %v293 = vunpack.c.l.b16 %v42
  %v294 = vunpack.c.l.b16 %v43
  %v295 = vunpack.c.l.b16 %v44
  %v296 = vunpack.c.l.b16 %v45
  %v297 = vunpack.c.l.b16 %v46
  %v298 = vunpack.c.l.b16 %v47
  %v299 = vunpack.c.l.b16 %v48
  %v300 = vunpack.c.l.b16 %v49
  %v301 = vunpack.c.l.b16 %v50
  %v302 = vunpack.c.l.b16 %v51
  %v303 = vunpack.c.l.b16 %v52
  %v304 = vunpack.c.l.b16 %v53
  %v305 = vunpack.c.l.b16 %v54
  %v306 = vunpack.c.l.b16 %v55
  %v307 = vunpack.c.l.b16 %v56
  %v308 = vunpack.c.l.b16 %v57
  %v309 = vunpack.c.l.b16 %v58
  %v310 = vunpack.c.l.b16 %v59
  %v311 = vunpack.c.l.b16 %v60
  %v312 = vunpack.c.l.b16 %v61
  %v313 = vunpack.c.l.b16 %v62
  %v314 = vunpack.c.l.b16 %v63
  %v315 = vunpack.c.l.b16 %v64
  %v316 = vunpack.c.l.b16 %v65
  %v317 = vunpack.c.l.b16 %v66
  %v318 = vunpack.c.l.b16 %v67
  %v319 = vunpack.c.l.b16 %v68
  %v320 = vunpack.c.l.b16 %v69
  %v321 = vunpack.c.l.b16 %v70
  %v322 = vunpack.c.l.b16 %v71
  %v323 = vunpack.c.l.b16 %v72
  %v324 = vunpack.c.l.b16 %v73
  %v325 = vunpack.c.l.b16 %v74
  %v326 = vunpack.c.l.b16 %v75
  %v327 = vunpack.c.l.b16 %v76
  %v328 = vunpack.c.l.b16 %v77
  %v329 = vunpack.c.l.b16 %v78
  %v330 = vunpack.c.l.b16 %v79
  %v331 = vunpack.c.l.b16 %v80
  %v332 = vunpack.c.l.b16 %v81
  %v333 = vunpack.c.l.b16 %v82
  %v334 = vunpack.c.l.b16 %v83
  %v335 = vunpack.c.l.b16 %v84
  %v336 = vunpack.c.l.b16 %v85
  %v337 = vunpack.c.l.b16 %v86
  %v338 = vunpack.c.l.b16 %v87
  %v339 = vunpack.c.l.b16 %v88
  %v340 = vunpack.c.l.b16 %v89
  %v341 = vunpack.c.l.b16 %v90
  %v342 = vunpack.c.l.b16 %v91
  %v343 = vunpack.c.l.b16 %v92
  %v344 = vunpack.c.l.b16 %v93
  %v345 = vunpack.c.l.b16 %v94
  %v346 = vunpack.c.l.b16 %v95
  %v347 = vunpack.c.l.b16 %v96
  %v348 = vunpack.c.l.b16 %v97
  %v349 = vunpack.c.l.b16 %v98
  %v350 = vunpack.c.l.b16 %v99
  %v351 = vunpack.c.l.b16 %v100
  %v352 = vunpack.c.l.b16 %v101
  %v353 = vunpack.c.l.b16 %v102
  %v354 = vunpack.c.l.b16 %v103
  %v355 = vunpack.c.l.b16 %v104
  %v356 = vunpack.c.l.b16 %v105
  %v357 = vunpack.c.l.b16 %v106
  %v358 = vunpack.c.l.b16 %v107
  %v359 = vunpack.c.l.b16 %v108
  %v360 = vunpack.c.l.b16 %v109
  %v361 = vunpack.c.l.b16 %v110
  %v362 = vpack.c.b16 %v291, %v290
  %v363 = vpack.c.b16 %v293, %v292
  %v364 = vpack.c.b16 %v295, %v294
  %v365 = vpack.c.b16 %v297, %v296
  %v366 = vpack.c.b16 %v299, %v298
  %v367 = vpack.c.b16 %v301, %v300
  %v368 = vpack.c.b16 %v303, %v302
  %v369 = vpack.c.b16 %v305, %v304
  %v370 = vpack.c.b16 %v307, %v306
  %v371 = vpack.c.b16 %v309, %v308
  %v372 = vpack.c.b16 %v311, %v310
  %v373 = vpack.c.b16 %v313, %v312
  %v374 = vpack.c.b16 %v315, %v314
  %v375 = vpack.c.b16 %v317, %v316
  %v376 = vpack.c.b16 %v319, %v318
  %v377 = vpack.c.b16 %v321, %v320
  %v378 = vpack.c.b16 %v323, %v322
  %v379 = vpack.c.b16 %v325, %v324
  %v380 = vpack.c.b16 %v327, %v326
  %v381 = vpack.c.b16 %v329, %v328
  %v382 = vpack.c.b16 %v331, %v330
  %v383 = vpack.c.b16 %v333, %v332
  %v384 = vpack.c.b16 %v335, %v334
  %v385 = vpack.c.b16 %v337, %v336
  %v386 = vpack.c.b16 %v339, %v338
  %v387 = vpack.c.b16 %v341, %v340
  %v388 = vpack.c.b16 %v343, %v342
  %v389 = vpack.c.b16 %v345, %v344
  %v390 = vpack.c.b16 %v347, %v346
  %v391 = vpack.c.b16 %v349, %v348
  %v392 = vpack.c.b16 %v351, %v350
  %v393 = vpack.c.b16 %v353, %v352
  %v394 = vpack.c.b16 %v355, %v354
  %v395 = vpack.c.b16 %v357, %v356
  %v396 = vpack.c.b16 %v359, %v358
  %v397 = vpack.c.b16 %v361, %v360
  %vm434 = vcmask 523264
  %v436 = vsel %vm434, %v186, 0
  %v439 = vsel %vm434, %v191, 0
  %v442 = vsel %vm434, %v196, 0
  %v445 = vsel %vm434, %v201, 0
  %447 = vmatprep.subr.bf16.mxu0 0
  %448 = vmatpush1.bf16.msra.mxu0 %v362
  %449 = vmatprep.subr.bf16.mxu0 0
  %450 = vmatpush1.bf16.msra.mxu0 %v363
  %451 = vmatprep.subr.bf16.mxu0 0
  %452 = vmatpush1.bf16.msra.mxu0 %v364
  %453 = vmatprep.subr.bf16.mxu0 0
  %454 = vmatpush1.bf16.msra.mxu0 %v365
  %455 = vmatprep.subr.bf16.mxu0 0
  %456 = vmatpush1.bf16.msra.mxu0 %v366
  %457 = vmatprep.subr.bf16.mxu0 0
  %458 = vmatpush1.bf16.msra.mxu0 %v367
  %459 = vmatprep.subr.bf16.mxu0 0
  %460 = vmatpush1.bf16.msra.mxu0 %v368
  %461 = vmatprep.subr.bf16.mxu0 0
  %462 = vmatpush1.bf16.msra.mxu0 %v369
  %463 = vmatprep.subr.bf16.mxu0 0
  %464 = vmatpush1.bf16.msra.mxu0 %v370
  %465 = vmatprep.subr.bf16.mxu0 0
  %466 = vmatpush1.bf16.msra.mxu0 %v371
  %467 = vmatprep.subr.bf16.mxu0 0
  %468 = vmatpush1.bf16.msra.mxu0 %v372
  %469 = vmatprep.subr.bf16.mxu0 0
  %470 = vmatpush1.bf16.msra.mxu0 %v373
  %471 = vmatprep.subr.bf16.mxu0 0
  %472 = vmatpush1.bf16.msra.mxu0 %v374
  %473 = vmatprep.subr.bf16.mxu0 0
  %474 = vmatpush1.bf16.msra.mxu0 %v375
  %475 = vmatprep.subr.bf16.mxu0 0
  %476 = vmatpush1.bf16.msra.mxu0 %v376
  %477 = vmatprep.subr.bf16.mxu0 0
  %478 = vmatpush1.bf16.msra.mxu0 %v377
  %479 = vmatprep.mubr.bf16.mxu0 %v183
  %480 = vmatmul.mubr.bf16.gmra.mrb[0].mxu0 %v182
  %v481 = vpop.f32.mrb[0].mxu0
  %v482 = vadd.f32 %v116, %v481
  %v483 = vpop.f32.mrb[0].mxu0
  %v484 = vpop.f32.mrb[0].mxu0
  %v485 = vadd.f32 %v116, %v484
  %v486 = vpop.f32.mrb[0].mxu0
  %487 = vmatprep.mubr.bf16.mxu0 %v188
  %488 = vmatmul.mubr.bf16.gmra.mrb[0].mxu0 %v187
  %v489 = vpop.f32.mrb[0].mxu0
  %v490 = vadd.f32 %v116, %v489
  %v491 = vpop.f32.mrb[0].mxu0
  %v492 = vpop.f32.mrb[0].mxu0
  %v493 = vadd.f32 %v116, %v492
  %v494 = vpop.f32.mrb[0].mxu0
  %495 = vmatprep.mubr.bf16.mxu0 %v193
  %496 = vmatmul.mubr.bf16.gmra.mrb[0].mxu0 %v192
  %v497 = vpop.f32.mrb[0].mxu0
  %v498 = vadd.f32 %v116, %v497
  %v499 = vpop.f32.mrb[0].mxu0
  %v500 = vpop.f32.mrb[0].mxu0
  %v501 = vadd.f32 %v116, %v500
  %v502 = vpop.f32.mrb[0].mxu0
  %503 = vmatprep.mubr.bf16.mxu0 %v198
  %504 = vmatmul.mubr.bf16.gmra.mrb[0].mxu0 %v197
  %v505 = vpop.f32.mrb[0].mxu0
  %v506 = vadd.f32 %v116, %v505
  %v507 = vpop.f32.mrb[0].mxu0
  %v508 = vpop.f32.mrb[0].mxu0
  %v509 = vadd.f32 %v116, %v508
  %v510 = vpop.f32.mrb[0].mxu0
  %511 = vdwg.mxu0
  %512 = vmatprep.subr.bf16.mxu0 0
  %513 = vmatpush1.bf16.msra.mxu0 %v378
  %514 = vmatprep.subr.bf16.mxu0 0
  %515 = vmatpush1.bf16.msra.mxu0 %v379
  %516 = vmatprep.subr.bf16.mxu0 0
  %517 = vmatpush1.bf16.msra.mxu0 %v380
  %518 = vmatprep.subr.bf16.mxu0 0
  %519 = vmatpush1.bf16.msra.mxu0 %v381
  %520 = vmatprep.subr.bf16.mxu0 0
  %521 = vmatpush1.bf16.msra.mxu0 %v382
  %522 = vmatprep.subr.bf16.mxu0 0
  %523 = vmatpush1.bf16.msra.mxu0 %v383
  %524 = vmatprep.subr.bf16.mxu0 0
  %525 = vmatpush1.bf16.msra.mxu0 %v384
  %526 = vmatprep.subr.bf16.mxu0 0
  %527 = vmatpush1.bf16.msra.mxu0 %v385
  %528 = vmatprep.subr.bf16.mxu0 0
  %529 = vmatpush1.bf16.msra.mxu0 %v386
  %530 = vmatprep.subr.bf16.mxu0 0
  %531 = vmatpush1.bf16.msra.mxu0 %v387
  %532 = vmatprep.subr.bf16.mxu0 0
  %533 = vmatpush1.bf16.msra.mxu0 %v388
  %534 = vmatprep.subr.bf16.mxu0 0
  %535 = vmatpush1.bf16.msra.mxu0 %v389
  %536 = vmatprep.subr.bf16.mxu0 0
  %537 = vmatpush1.bf16.msra.mxu0 %v390
  %538 = vmatprep.subr.bf16.mxu0 0
  %539 = vmatpush1.bf16.msra.mxu0 %v391
  %540 = vmatprep.subr.bf16.mxu0 0
  %541 = vmatpush1.bf16.msra.mxu0 %v392
  %542 = vmatprep.subr.bf16.mxu0 0
  %543 = vmatpush1.bf16.msra.mxu0 %v393
  %544 = vmatprep.mubr.bf16.mxu0 %v185
  %545 = vmatmul.mubr.bf16.gmra.mrb[0].mxu0 %v184
  %v546 = vpop.f32.mrb[0].mxu0
  %v547 = vadd.f32 %v482, %v546
  %v548 = vpop.f32.mrb[0].mxu0
  %v549 = vpop.f32.mrb[0].mxu0
  %v550 = vadd.f32 %v485, %v549
  %v551 = vpop.f32.mrb[0].mxu0
  %552 = vmatprep.mubr.bf16.mxu0 %v190
  %553 = vmatmul.mubr.bf16.gmra.mrb[0].mxu0 %v189
  %v554 = vpop.f32.mrb[0].mxu0
  %v555 = vadd.f32 %v490, %v554
  %v556 = vpop.f32.mrb[0].mxu0
  %v557 = vpop.f32.mrb[0].mxu0
  %v558 = vadd.f32 %v493, %v557
  %v559 = vpop.f32.mrb[0].mxu0
  %560 = vmatprep.mubr.bf16.mxu0 %v195
  %561 = vmatmul.mubr.bf16.gmra.mrb[0].mxu0 %v194
  %v562 = vpop.f32.mrb[0].mxu0
  %v563 = vadd.f32 %v498, %v562
  %v564 = vpop.f32.mrb[0].mxu0
  %v565 = vpop.f32.mrb[0].mxu0
  %v566 = vadd.f32 %v501, %v565
  %v567 = vpop.f32.mrb[0].mxu0
  %568 = vmatprep.mubr.bf16.mxu0 %v200
  %569 = vmatmul.mubr.bf16.gmra.mrb[0].mxu0 %v199
  %v570 = vpop.f32.mrb[0].mxu0
  %v571 = vadd.f32 %v506, %v570
  %v572 = vpop.f32.mrb[0].mxu0
  %v573 = vpop.f32.mrb[0].mxu0
  %v574 = vadd.f32 %v509, %v573
  %v575 = vpop.f32.mrb[0].mxu0
  %576 = vdwg.mxu0
  %577 = vmatprep.subr.bf16.mxu0 0
  %578 = vmatpush1.bf16.msra.mxu0 %v394
  %579 = vmatprep.subr.bf16.mxu0 0
  %580 = vmatpush1.bf16.msra.mxu0 %v395
  %581 = vmatprep.subr.bf16.mxu0 0
  %582 = vmatpush1.bf16.msra.mxu0 %v396
  %583 = vmatprep.subr.bf16.mxu0 0
  %584 = vmatpush1.bf16.msra.mxu0 %v397
  %585 = vmatprep.subr.bf16.mxu0 0
  %586 = vmatpush1.bf16.msra.mxu0 0
  %587 = vmatprep.subr.bf16.mxu0 0
  %588 = vmatpush1.bf16.msra.mxu0 0
  %589 = vmatprep.subr.bf16.mxu0 0
  %590 = vmatpush1.bf16.msra.mxu0 0
  %591 = vmatprep.subr.bf16.mxu0 0
  %592 = vmatpush1.bf16.msra.mxu0 0
  %593 = vmatprep.subr.bf16.mxu0 0
  %594 = vmatpush1.bf16.msra.mxu0 0
  %595 = vmatprep.subr.bf16.mxu0 0
  %596 = vmatpush1.bf16.msra.mxu0 0
  %597 = vmatprep.subr.bf16.mxu0 0
  %598 = vmatpush1.bf16.msra.mxu0 0
  %599 = vmatprep.subr.bf16.mxu0 0
  %600 = vmatpush1.bf16.msra.mxu0 0
  %601 = vmatprep.subr.bf16.mxu0 0
  %602 = vmatpush1.bf16.msra.mxu0 0
  %603 = vmatprep.subr.bf16.mxu0 0
  %604 = vmatpush1.bf16.msra.mxu0 0
  %605 = vmatprep.subr.bf16.mxu0 0
  %606 = vmatpush1.bf16.msra.mxu0 0
  %607 = vmatprep.subr.bf16.mxu0 0
  %608 = vmatpush1.bf16.msra.mxu0 0
  %609 = vmatprep.mubr.bf16.mxu0 0
  %610 = vmatmul.mubr.bf16.gmra.mrb[0].mxu0 %v436
  %v611 = vpop.f32.mrb[0].mxu0
  %v612 = vadd.f32 %v547, %v611
  %v613 = vpop.f32.mrb[0].mxu0
  %v614 = vpop.f32.mrb[0].mxu0
  %v615 = vadd.f32 %v550, %v614
  %v616 = vpop.f32.mrb[0].mxu0
  %617 = vmatprep.mubr.bf16.mxu0 0
  %618 = vmatmul.mubr.bf16.gmra.mrb[0].mxu0 %v439
  %v619 = vpop.f32.mrb[0].mxu0
  %v620 = vadd.f32 %v555, %v619
  %v621 = vpop.f32.mrb[0].mxu0
  %v622 = vpop.f32.mrb[0].mxu0
  %v623 = vadd.f32 %v558, %v622
  %v624 = vpop.f32.mrb[0].mxu0
  %625 = vmatprep.mubr.bf16.mxu0 0
  %626 = vmatmul.mubr.bf16.gmra.mrb[0].mxu0 %v442
  %v627 = vpop.f32.mrb[0].mxu0
  %v628 = vadd.f32 %v563, %v627
  %v629 = vpop.f32.mrb[0].mxu0
  %v630 = vpop.f32.mrb[0].mxu0
  %v631 = vadd.f32 %v566, %v630
  %v632 = vpop.f32.mrb[0].mxu0
  %633 = vmatprep.mubr.bf16.mxu0 0
  %634 = vmatmul.mubr.bf16.gmra.mrb[0].mxu0 %v445
  %v635 = vpop.f32.mrb[0].mxu0
  %v636 = vadd.f32 %v571, %v635
  %v637 = vpop.f32.mrb[0].mxu0
  %v638 = vpop.f32.mrb[0].mxu0
  %v639 = vadd.f32 %v574, %v638
  %v640 = vpop.f32.mrb[0].mxu0
  %641 = vdwg.mxu0
  %v642 = vmax.f32 %v612, 0.0
  %v643 = vmax.f32 %v615, 0.0
  %v644 = vmax.f32 %v620, 0.0
  %v645 = vmax.f32 %v623, 0.0
  %v646 = vmax.f32 %v628, 0.0
  %v647 = vmax.f32 %v631, 0.0
  %v648 = vmax.f32 %v636, 0.0
  %v649 = vmax.f32 %v639, 0.0
  %v650 = vpack.c.bf16 %v643, %v642
  %v651 = vpack.c.bf16 %v645, %v644
  %v652 = vpack.c.bf16 %v647, %v646
  %v653 = vpack.c.bf16 %v649, %v648
  %v658 = vunpack.c.l.b16 %v650
  %v659 = vunpack.c.h.b16 %v650
  %v660 = vunpack.c.l.b16 %v651
  %v661 = vunpack.c.h.b16 %v651
  %v662 = vunpack.c.l.b16 %v652
  %v663 = vunpack.c.h.b16 %v652
  %v664 = vunpack.c.l.b16 %v653
  %v665 = vunpack.c.h.b16 %v653
  %v666 = vpack.c.b16 %v658, %v658
  %v667 = vpack.c.b16 %v659, %v659
  %v668 = vpack.c.b16 %v660, %v660
  %v669 = vpack.c.b16 %v661, %v661
  %v670 = vpack.c.b16 %v662, %v662
  %v671 = vpack.c.b16 %v663, %v663
  %v672 = vpack.c.b16 %v664, %v664
  %v673 = vpack.c.b16 %v665, %v665
  %vm682 = vcmask 519168
  %683 = vst.msk [vmem:[%s3] sm:$0xf] %vm682, %v666
  %684 = vst.msk [vmem:[%s3 + $0x4] sm:$0xf] %vm682, %v667
  %685 = vst.msk [vmem:[%s3 + $0x8] sm:$0xf] %vm682, %v668
  %686 = vst.msk [vmem:[%s3 + $0xc] sm:$0xf] %vm682, %v669
  %687 = vst.msk [vmem:[%s3 + $0x10] sm:$0xf] %vm682, %v670
  %688 = vst.msk [vmem:[%s3 + $0x14] sm:$0xf] %vm682, %v671
  %689 = vst.msk [vmem:[%s3 + $0x18] sm:$0xf] %vm682, %v672
  %690 = vst.msk [vmem:[%s3 + $0x1c] sm:$0xf] %vm682, %v673
  // Predicated region
  $region14: #{_loss.12} parent=0 // pred_check
    _
  $region15: #{_loss.12} parent=0 // pred_check_branch
    %692 = sbr.rel (0) target = $region17
  $region16: #{_loss.12} parent=0 // pred_region
    _
  $region17: #{_loss.12} parent=0 // pred_fallthru
    _
  // Predicated region
  $region18: #{_loss.12} parent=0 // pred_check
    _
  $region19: #{_loss.12} parent=0 // pred_check_branch
    %694 = sbr.rel (0) target = $region21
  $region20: #{_loss.12} parent=0 // pred_region
    _
  $region21: #{_loss.12} parent=0 // pred_fallthru
    _

// kernel: _loss.17
$region0: #{_loss.17}
  #allocation0 [shape = 'u32[]', space=smem, size = 0x4, offset = 0x4, fixed_abs, tag = 'smem constant byte address 0x4 - core index']
  #allocation1 [shape = 'u32[144,128]{1,0:T(1,128)}', space=vmem, size = 0x12000, scoped, tag = 'internal scratch']
  #allocation2 [shape = 'f32[1,128]{1,0:T(1,128)}', space=vmem, size = 0x200, scoped, tag = 'scratch operand']
  %s0 = inlined_call_operand.vmem [shape: bf16[16,128], index: 0, kind: input, shape index: {}]
  %s1 = inlined_call_operand.vmem [shape: bf16[16,128], index: 1, kind: input, shape index: {}]
  %s2 = inlined_call_operand.vmem [shape: f32[1,128], index: 2, kind: output, shape index: {}]
  %s3 = sld [smem:[#allocation0]]
  $region26: #{_loss.17} parent=0
    _
  %s5 = ssub.s32 1, %s3
  %s6 = scalar_select 0, %s5, %s3
  // Predicated region
  $region2: #{_loss.17} parent=0 // pred_check
    _
  $region3: #{_loss.17} parent=0 // pred_check_branch
    %8 = sbr.rel (0) target = $region5
  $region4: #{_loss.17} parent=0 // pred_region
    _
  $region5: #{_loss.17} parent=0 // pred_fallthru
    _
  // Predicated region
  $region6: #{_loss.17} parent=0 // pred_check
    _
  $region7: #{_loss.17} parent=0 // pred_check_branch
    %10 = sbr.rel (0) target = $region9
  $region8: #{_loss.17} parent=0 // pred_region
    _
  $region9: #{_loss.17} parent=0 // pred_fallthru
    _
  %p11 = scmp.eq.s32.totalorder 0, 0
  // Predicated region
  $region10: #{_loss.17} parent=0 // pred_check
    %p12 = pneg %p11
  $region11: #{_loss.17} parent=0 // pred_check_branch
    %14 = sbr.rel (%p12) target = $region13
  $region12: #{_loss.17} parent=0 // pred_region
    %15 = vst [vmem:[#allocation2] sm:$0x1] 0.0
  $region13: #{_loss.17} parent=0 // pred_fallthru
    _
  %v16 = vld [vmem:[%s0] sm:$0xf]
  %v17 = vld [vmem:[%s0 + $0x4] sm:$0xf]
  %v18 = vunpack.c.l.bf16 %v16
  %v19 = vunpack.c.l.bf16 %v17
  %v20 = vld [vmem:[%s1] sm:$0xf]
  %v21 = vld [vmem:[%s1 + $0x4] sm:$0xf]
  %v22 = vunpack.c.l.bf16 %v20
  %v23 = vunpack.c.l.bf16 %v21
  %v24 = vsub.f32 %v18, %v22
  %v25 = vsub.f32 %v19, %v23
  %v26 = vld [vmem:[#allocation2] sm:$0x1]
  %v27 = vmul.f32 %v24, %v24
  %v28 = vmul.f32 %v25, %v25
  %v29 = vsub.f32 0.0, %v27
  %v30 = vsub.f32 0.0, %v28
  %v31 = vmul.f32 %v29, 1.442695
  %v32 = vpow.pop %v31
  %v33 = vmul.f32 %v30, 1.442695
  %v34 = vpow.pop %v33
  %v35 = vadd.f32 %v32, %v34
  %v36 = vrot.slane %v35, 4
  %v37 = vadd.f32 %v35, %v36
  %v38 = vrot.slane %v37, 2
  %v39 = vadd.f32 %v37, %v38
  %v40 = vrot.slane %v39, 1
  %v41 = vadd.f32 %v39, %v40
  %v42 = vadd.f32 %v26, %v41
  %43 = vst [vmem:[#allocation2] sm:$0x1] %v42
  // Predicated region
  $region14: #{_loss.17} parent=0 // pred_check
    %p44 = pneg %p11
  $region15: #{_loss.17} parent=0 // pred_check_branch
    %46 = sbr.rel (%p44) target = $region17
  $region16: #{_loss.17} parent=0 // pred_region
    %v47 = vld [vmem:[#allocation2] sm:$0x1]
    %48 = vst [vmem:[%s2] sm:$0x1] %v47
  $region17: #{_loss.17} parent=0 // pred_fallthru
    _
  // Predicated region
  $region18: #{_loss.17} parent=0 // pred_check
    _
  $region19: #{_loss.17} parent=0 // pred_check_branch
    %50 = sbr.rel (0) target = $region21
  $region20: #{_loss.17} parent=0 // pred_region
    _
  $region21: #{_loss.17} parent=0 // pred_fallthru
    _
  // Predicated region
  $region22: #{_loss.17} parent=0 // pred_check
    _
  $region23: #{_loss.17} parent=0 // pred_check_branch
    %52 = sbr.rel (0) target = $region25
  $region24: #{_loss.17} parent=0 // pred_region
    _
  $region25: #{_loss.17} parent=0 // pred_fallthru
    _

</llo_original>
